<compile_context>
chip_gen: v7x
topology: tpu7x:2x2x1
jax: 0.10.0
libtpu: 0.0.40
codegen_flags: <defaults>
</compile_context>

<pallas_src>
import functools

import jax
import jax.numpy as jnp
import numpy as np
from jax.experimental import pallas as pl
from jax.experimental.pallas import tpu as pltpu

LANE = 128          # lane width; padded class / feature-channel slab
KH = KW = 3         # backbone conv kernel size


# ----------------------------------------------------------------------------
# Pallas kernels
# ----------------------------------------------------------------------------

def _conv3x3_rows(xp_rows, t_ref, b_ref, h):
    """3x3 conv (padding already applied) as three banded matmuls on image rows.

    xp_rows: [h+2, K] f32 rows of the zero-padded image with (w, c) flattened
             (and zero-padded) into the K lane axis.
    t_ref:   [3, K, W*Cout] bf16 banded weights, one slab per kernel row.
    b_ref:   [1, W*Cout] f32 bias tiled along W.
    Returns post-ReLU features [h, W*Cout] f32, lane-dense, (h, w, c) order."""
    acc = jnp.dot(xp_rows[0:h].astype(jnp.bfloat16), t_ref[0],
                  preferred_element_type=jnp.float32)
    acc = acc + jnp.dot(xp_rows[1:h + 1].astype(jnp.bfloat16), t_ref[1],
                        preferred_element_type=jnp.float32)
    acc = acc + jnp.dot(xp_rows[2:h + 2].astype(jnp.bfloat16), t_ref[2],
                        preferred_element_type=jnp.float32)
    return jnp.maximum(acc + b_ref[...], 0.0)


def _conv_features_kernel(xp_ref, t_ref, b_ref, o_ref, *, h):
    # forward_features: in-kernel "im2col" via banded weights; one image per
    # grid step (batch grid axis is "parallel" for v7x megacore).
    o_ref[0] = _conv3x3_rows(xp_ref[0], t_ref, b_ref, h).astype(o_ref.dtype)


def _conv_pool_head_kernel(xp_ref, t_ref, b_ref, mh_ref, bh_ref, o_ref, *, h):
    # Fused forward_features + forward_head (GAP + Linear): the feature map
    # never leaves VMEM.  The average over W is folded into mh_ref at init;
    # the average over H is a sublane-axis mean here.
    feat = _conv3x3_rows(xp_ref[0], t_ref, b_ref, h)            # [h, W*Cout] f32
    pooled = jnp.mean(feat, axis=0, keepdims=True)              # [1, W*Cout]
    logits = jnp.dot(pooled.astype(jnp.bfloat16), mh_ref[...],
                     preferred_element_type=jnp.float32) + bh_ref[...]
    o_ref[0] = logits.astype(o_ref.dtype)


def _mlp_head_kernel(x_ref, w1_ref, b1_ref, w2_ref, b2_ref, w3_ref, b3_ref,
                     o_ref, acc_ref):
    # Custom classifier head.  Layer 1 (the big one) is K-tiled over the grid
    # with an f32 VMEM accumulator; layers 2 and 3 run once in the epilogue.
    k = pl.program_id(0)

    @pl.when(k == 0)
    def _init():
        acc_ref[...] = jnp.zeros_like(acc_ref)

    acc_ref[...] += jnp.dot(x_ref[...], w1_ref[...],
                            preferred_element_type=jnp.float32)

    @pl.when(k == pl.num_programs(0) - 1)
    def _epilogue():
        # TODO(synk): Dropout(p=0.2) is inference-mode identity (no RNG mask).
        h1 = jnp.maximum(acc_ref[...] + b1_ref[...], 0.0)
        h2 = jnp.dot(h1.astype(jnp.bfloat16), w2_ref[...],
                     preferred_element_type=jnp.float32) + b2_ref[...]
        h2 = jnp.maximum(h2, 0.0)
        out = jnp.dot(h2.astype(jnp.bfloat16), w3_ref[...],
                      preferred_element_type=jnp.float32) + b3_ref[...]
        o_ref[...] = out.astype(o_ref.dtype)


# ----------------------------------------------------------------------------
# Weight preparation (host-side, one-time)
# ----------------------------------------------------------------------------

def _uniform(key, shape, fan_in):
    bound = 1.0 / float(fan_in) ** 0.5
    return jax.random.uniform(key, shape, jnp.float32, -bound, bound)


def _round_up(x, m):
    return ((x + m - 1) // m) * m


def _conv_toeplitz(w_conv, kdim, width):
    """Torch-layout conv weight [Cout, Cin, KH, KW] -> banded matmul weights.

    T[i, (w+j)*Cin + c, w*Cout + f] = w_conv[f, c, i, j]  so that
    out[h, w*Cout+f] = sum_i  padded_row[h+i, :] @ T[i]  is the 3x3 conv."""
    w_np = np.asarray(w_conv, dtype=np.float32)
    cout, cin, kh, kw = w_np.shape
    t = np.zeros((kh, kdim, width * cout), np.float32)
    for i in range(kh):
        for j in range(kw):
            tap = w_np[:, :, i, j].T                             # [Cin, Cout]
            for w in range(width):
                t[i, (w + j) * cin:(w + j + 1) * cin,
                  w * cout:(w + 1) * cout] = tap
    return jnp.asarray(t)


def _pool_head_matrix(w_head, width, lane):
    """Fold the width part of global-average-pool into the head linear.

    w_head: [Cout, num_classes].  Returns [width*Cout, lane], class-padded."""
    w_np = np.asarray(w_head, dtype=np.float32)
    cout, ncls = w_np.shape
    m = np.zeros((width * cout, lane), np.float32)
    for w in range(width):
        m[w * cout:(w + 1) * cout, :ncls] = w_np / float(width)
    return jnp.asarray(m)


# ----------------------------------------------------------------------------
# Model wrapper
# ----------------------------------------------------------------------------

class TransferLearningModelPallas:
    """JAX/Pallas re-implementation of TransferLearningModel's forward pass."""

    def __init__(self, num_classes: int, use_custom_classifier: bool,
                 in_ch: int = 3, feat_ch: int = 8, spatial: int = 16,
                 key=jax.random.PRNGKey(0)):
        assert num_classes <= LANE
        self.num_classes = num_classes
        self.use_custom_classifier = use_custom_classifier
        self.in_ch = in_ch
        self.feat_ch = feat_ch
        self.spatial = spatial
        self.kdim = _round_up((spatial + 2) * in_ch, 64)   # zero-padded conv K

        ks = jax.random.split(key, 10)

        # Backbone 3x3 conv, PyTorch layout [Cout, Cin, KH, KW].
        fan_conv = in_ch * KH * KW
        w_conv = _uniform(ks[0], (feat_ch, in_ch, KH, KW), fan_conv)
        b_conv = _uniform(ks[1], (1, feat_ch), fan_conv)
        self.w_conv_t = _conv_toeplitz(w_conv, self.kdim,
                                       spatial).astype(jnp.bfloat16)
        self.b_conv_row = jnp.tile(b_conv, (1, spatial))         # [1, W*Cout] f32

        num_ftrs = feat_ch * spatial * spatial
        self.num_ftrs = num_ftrs

        # Custom classifier MLP.  w1 is defined in PyTorch NCHW-flatten row
        # order, then permuted ONCE so the kernel consumes (h, w, c)-flattened
        # features directly (removes the per-call feature-map transpose).
        w1_chw = _uniform(ks[2], (num_ftrs, 512), num_ftrs)
        w1_hwc = jnp.transpose(
            w1_chw.reshape(feat_ch, spatial, spatial, 512),
            (1, 2, 0, 3)).reshape(num_ftrs, 512)
        self.w1 = w1_hwc.astype(jnp.bfloat16)
        self.b1 = _uniform(ks[3], (1, 512), num_ftrs)
        self.w2 = _uniform(ks[4], (512, 256), 512).astype(jnp.bfloat16)
        self.b2 = _uniform(ks[5], (1, 256), 512)
        w3 = _uniform(ks[6], (256, num_classes), 256)
        self.w3 = jnp.pad(w3, ((0, 0), (0, LANE - num_classes))
                          ).astype(jnp.bfloat16)
        self.b3 = jnp.pad(_uniform(ks[7], (1, num_classes), 256),
                          ((0, 0), (0, LANE - num_classes)))

        # Default classifier head (forward_head = GAP + Linear(feat_ch, classes))
        # with the width-average folded in and class lanes padded to 128.
        w_head = _uniform(ks[8], (feat_ch, num_classes), feat_ch)
        self.w_head_pool = _pool_head_matrix(w_head, spatial,
                                             LANE).astype(jnp.bfloat16)
        self.b_head = jnp.pad(_uniform(ks[9], (1, num_classes), feat_ch),
                              ((0, 0), (0, LANE - num_classes)))

    # ---- input prep: NCHW -> padded image rows with (w, c) on the lane axis --
    def _padded_rows(self, x_nchw):
        x = jnp.transpose(x_nchw, (0, 2, 3, 1)).astype(jnp.float32)   # NHWC
        B, H, W, C = x.shape
        assert H == self.spatial and W == self.spatial and C == self.in_ch
        xp = jnp.pad(x, ((0, 0), (1, 1), (1, 1), (0, 0)))
        xp = xp.reshape(B, H + 2, (W + 2) * C)
        return jnp.pad(xp, ((0, 0), (0, 0), (0, self.kdim - (W + 2) * C)))

    # ---- backbone features for the custom-classifier path ------------------
    def _forward_features(self, xp_rows):
        B, Hp, _ = xp_rows.shape
        H = Hp - 2
        n_out = self.spatial * self.feat_ch
        kernel = functools.partial(_conv_features_kernel, h=H)
        cost = pl.CostEstimate(
            flops=2 * B * H * KH * self.kdim * n_out,
            transcendentals=0,
            bytes_accessed=xp_rows.size * 4 + self.w_conv_t.size * 2
            + B * H * n_out * 2)
        return pl.pallas_call(
            kernel,
            out_shape=jax.ShapeDtypeStruct((B, H, n_out), jnp.bfloat16),
            grid=(B,),
            in_specs=[
                pl.BlockSpec((1, Hp, self.kdim), lambda b: (b, 0, 0)),
                pl.BlockSpec((KH, self.kdim, n_out), lambda b: (0, 0, 0)),
                pl.BlockSpec((1, n_out), lambda b: (0, 0)),
            ],
            out_specs=pl.BlockSpec((1, H, n_out), lambda b: (b, 0, 0)),
            compiler_params=pltpu.CompilerParams(
                dimension_semantics=("parallel",)),
            cost_estimate=cost,
        )(xp_rows, self.w_conv_t, self.b_conv_row)

    # ---- fused conv + GAP + linear for the default-classifier path ---------
    def _forward_default_head(self, xp_rows):
        B, Hp, _ = xp_rows.shape
        H = Hp - 2
        n_out = self.spatial * self.feat_ch
        kernel = functools.partial(_conv_pool_head_kernel, h=H)
        out = pl.pallas_call(
            kernel,
            out_shape=jax.ShapeDtypeStruct((B, 1, LANE), jnp.float32),
            grid=(B,),
            in_specs=[
                pl.BlockSpec((1, Hp, self.kdim), lambda b: (b, 0, 0)),
                pl.BlockSpec((KH, self.kdim, n_out), lambda b: (0, 0, 0)),
                pl.BlockSpec((1, n_out), lambda b: (0, 0)),
                pl.BlockSpec((n_out, LANE), lambda b: (0, 0)),
                pl.BlockSpec((1, LANE), lambda b: (0, 0)),
            ],
            out_specs=pl.BlockSpec((1, 1, LANE), lambda b: (b, 0, 0)),
            compiler_params=pltpu.CompilerParams(
                dimension_semantics=("parallel",)),
        )(xp_rows, self.w_conv_t, self.b_conv_row,
          self.w_head_pool, self.b_head)
        return out[:, 0, :self.num_classes]

    # ---- K-tiled custom MLP head --------------------------------------------
    def _forward_custom_head(self, flat):
        B, F = flat.shape
        tk = 512 if F % 512 == 0 else F
        cost = pl.CostEstimate(
            flops=2 * B * (F * 512 + 512 * 256 + 256 * LANE),
            transcendentals=0,
            bytes_accessed=flat.size * 2 + self.w1.size * 2
            + self.w2.size * 2 + self.w3.size * 2 + B * LANE * 4)
        out = pl.pallas_call(
            _mlp_head_kernel,
            out_shape=jax.ShapeDtypeStruct((B, LANE), jnp.float32),
            grid=(F // tk,),
            in_specs=[
                pl.BlockSpec((B, tk), lambda k: (0, k)),
                pl.BlockSpec((tk, 512), lambda k: (k, 0)),
                pl.BlockSpec((1, 512), lambda k: (0, 0)),
                pl.BlockSpec((512, 256), lambda k: (0, 0)),
                pl.BlockSpec((1, 256), lambda k: (0, 0)),
                pl.BlockSpec((256, LANE), lambda k: (0, 0)),
                pl.BlockSpec((1, LANE), lambda k: (0, 0)),
            ],
            out_specs=pl.BlockSpec((B, LANE), lambda k: (0, 0)),
            scratch_shapes=[pltpu.VMEM((B, 512), jnp.float32)],
            compiler_params=pltpu.CompilerParams(
                dimension_semantics=("arbitrary",),
                vmem_limit_bytes=32 * 1024 * 1024),
            cost_estimate=cost,
        )(flat, self.w1, self.b1, self.w2, self.b2, self.w3, self.b3)
        return out[:, :self.num_classes]

    @functools.partial(jax.jit, static_argnums=0)
    def __call__(self, x_nchw):
        xp_rows = self._padded_rows(x_nchw)
        if self.use_custom_classifier:
            feat = self._forward_features(xp_rows)      # [B, H, W*Cout] bf16
            # Row-major reshape = (h, w, c) flatten; w1 rows were pre-permuted
            # to this order, so no runtime transpose is needed.
            flat = feat.reshape(feat.shape[0], -1)
            return self._forward_custom_head(flat)
        return self._forward_default_head(xp_rows)


# ----------------------------------------------------------------------------
# Demo
# ----------------------------------------------------------------------------

if __name__ == "__main__":
    # Small but TPU-friendly shapes: batch 8 (fills MXU sublanes), 3x16x16
    # images, 8 feature channels -> a lane-dense [16, 128] feature tile/image.
    x = jax.random.normal(jax.random.PRNGKey(0), (8, 3, 16, 16), jnp.float32)

    # custom-classifier path (flatten + MLP head)
    model_custom = TransferLearningModelPallas(
        num_classes=10, use_custom_classifier=True, key=jax.random.PRNGKey(0))
    out_custom = jax.block_until_ready(model_custom(x))
    assert out_custom.shape == (8, 10)
    assert bool(jnp.all(jnp.isfinite(out_custom)))

    # default classifier path (forward_head = global avg pool + linear), fused
    model_default = TransferLearningModelPallas(
        num_classes=10, use_custom_classifier=False, key=jax.random.PRNGKey(1))
    out_default = jax.block_until_ready(model_default(x))
    assert out_default.shape == (8, 10)
    assert bool(jnp.all(jnp.isfinite(out_default)))

    print("KERNEL_OK")
</pallas_src>

<mosaic_0001>
module attributes {stable_mosaic.version = 11 : i64} {
  func.func @_conv_features_kernel(%arg0: i32, %arg1: memref<1x18x64xf32, #tpu.memory_space<vmem>>, %arg2: memref<3x64x128xbf16, #tpu.memory_space<vmem>>, %arg3: memref<1x128xf32, #tpu.memory_space<vmem>>, %arg4: memref<1x16x128xbf16, #tpu.memory_space<vmem>>) attributes {dimension_semantics = [#tpu.dimension_semantics<parallel>], iteration_bounds = array<i64: 8>, scalar_prefetch = 0 : i64, scratch_operands = 0 : i64, tpu.core_type = #tpu.core_type<tc>, window_params = [{transform_indices = @transform_0, window_bounds = array<i64: 1, 18, 64>}, {pipeline_mode = #tpu.pipeline_mode<synchronous>, transform_indices = @transform_1, window_bounds = array<i64: 3, 64, 128>}, {pipeline_mode = #tpu.pipeline_mode<synchronous>, transform_indices = @transform_2, window_bounds = array<i64: 1, 128>}, {transform_indices = @transform_3, window_bounds = array<i64: 1, 16, 128>}]} {
    %c0 = arith.constant 0 : index
    %c0_0 = arith.constant 0 : index
    %c0_1 = arith.constant 0 : index
    %0 = vector.load %arg1[%c0, %c0_0, %c0_1] : memref<1x18x64xf32, #tpu.memory_space<vmem>>, vector<1x18x64xf32>
    %1 = vector.shape_cast %0 : vector<1x18x64xf32> to vector<18x64xf32>
    %2 = vector.extract_strided_slice %1 {offsets = [0, 0], sizes = [16, 64], strides = [1, 1]} : vector<18x64xf32> to vector<16x64xf32>
    %3 = arith.truncf %2 : vector<16x64xf32> to vector<16x64xbf16>
    %c0_2 = arith.constant 0 : index
    %c0_3 = arith.constant 0 : index
    %c0_4 = arith.constant 0 : index
    %4 = vector.load %arg2[%c0_2, %c0_3, %c0_4] : memref<3x64x128xbf16, #tpu.memory_space<vmem>>, vector<1x64x128xbf16>
    %5 = vector.shape_cast %4 : vector<1x64x128xbf16> to vector<64x128xbf16>
    %cst = arith.constant dense<0.000000e+00> : vector<16x128xf32>
    %6 = tpu.matmul %3, %5, %cst {dimension_numbers = #tpu.dot_dimension_numbers<[1], [0], [0], [1], [0, 0, 1, 1], [], []>} : vector<16x64xbf16>, vector<64x128xbf16>, vector<16x128xf32> -> vector<16x128xf32>
    %7 = vector.extract_strided_slice %1 {offsets = [1, 0], sizes = [16, 64], strides = [1, 1]} : vector<18x64xf32> to vector<16x64xf32>
    %8 = arith.truncf %7 : vector<16x64xf32> to vector<16x64xbf16>
    %c1 = arith.constant 1 : index
    %c0_5 = arith.constant 0 : index
    %c0_6 = arith.constant 0 : index
    %9 = vector.load %arg2[%c1, %c0_5, %c0_6] : memref<3x64x128xbf16, #tpu.memory_space<vmem>>, vector<1x64x128xbf16>
    %10 = vector.shape_cast %9 : vector<1x64x128xbf16> to vector<64x128xbf16>
    %cst_7 = arith.constant dense<0.000000e+00> : vector<16x128xf32>
    %11 = tpu.matmul %8, %10, %cst_7 {dimension_numbers = #tpu.dot_dimension_numbers<[1], [0], [0], [1], [0, 0, 1, 1], [], []>} : vector<16x64xbf16>, vector<64x128xbf16>, vector<16x128xf32> -> vector<16x128xf32>
    %12 = arith.addf %6, %11 : vector<16x128xf32>
    %13 = vector.extract_strided_slice %1 {offsets = [2, 0], sizes = [16, 64], strides = [1, 1]} : vector<18x64xf32> to vector<16x64xf32>
    %14 = arith.truncf %13 : vector<16x64xf32> to vector<16x64xbf16>
    %c2 = arith.constant 2 : index
    %c0_8 = arith.constant 0 : index
    %c0_9 = arith.constant 0 : index
    %15 = vector.load %arg2[%c2, %c0_8, %c0_9] : memref<3x64x128xbf16, #tpu.memory_space<vmem>>, vector<1x64x128xbf16>
    %16 = vector.shape_cast %15 : vector<1x64x128xbf16> to vector<64x128xbf16>
    %cst_10 = arith.constant dense<0.000000e+00> : vector<16x128xf32>
    %17 = tpu.matmul %14, %16, %cst_10 {dimension_numbers = #tpu.dot_dimension_numbers<[1], [0], [0], [1], [0, 0, 1, 1], [], []>} : vector<16x64xbf16>, vector<64x128xbf16>, vector<16x128xf32> -> vector<16x128xf32>
    %18 = arith.addf %12, %17 : vector<16x128xf32>
    %c0_11 = arith.constant 0 : index
    %c0_12 = arith.constant 0 : index
    %19 = vector.load %arg3[%c0_11, %c0_12] : memref<1x128xf32, #tpu.memory_space<vmem>>, vector<1x128xf32>
    %20 = vector.broadcast %19 : vector<1x128xf32> to vector<16x128xf32>
    %21 = arith.addf %18, %20 : vector<16x128xf32>
    %cst_13 = arith.constant 0.000000e+00 : f32
    %22 = vector.broadcast %cst_13 : f32 to vector<16x128xf32>
    %23 = arith.maximumf %21, %22 : vector<16x128xf32>
    %24 = arith.truncf %23 : vector<16x128xf32> to vector<16x128xbf16>
    %c0_14 = arith.constant 0 : index
    %c0_15 = arith.constant 0 : index
    %c0_16 = arith.constant 0 : index
    %25 = vector.load %arg4[%c0_14, %c0_15, %c0_16] : memref<1x16x128xbf16, #tpu.memory_space<vmem>>, vector<1x16x128xbf16>
    %26 = vector.shape_cast %25 : vector<1x16x128xbf16> to vector<16x128xbf16>
    %27 = vector.shape_cast %24 : vector<16x128xbf16> to vector<1x16x128xbf16>
    tpu.vector_store %arg4[%c0_14, %c0_15, %c0_16], %27 {strides = array<i32>} : memref<1x16x128xbf16, #tpu.memory_space<vmem>>, vector<1x16x128xbf16>,
    return
  }
  func.func @transform_0(%arg0: i32) -> (i32, i32, i32) {
    %c0_i32 = arith.constant 0 : i32
    %c0_i32_0 = arith.constant 0 : i32
    %c0_i32_1 = arith.constant 0 : i32
    return %arg0, %c0_i32, %c0_i32_0 : i32, i32, i32
  }
  func.func @transform_1(%arg0: i32) -> (i32, i32, i32) {
    %c0_i32 = arith.constant 0 : i32
    %c0_i32_0 = arith.constant 0 : i32
    %c0_i32_1 = arith.constant 0 : i32
    %c0_i32_2 = arith.constant 0 : i32
    return %c0_i32, %c0_i32_0, %c0_i32_1 : i32, i32, i32
  }
  func.func @transform_2(%arg0: i32) -> (i32, i32) {
    %c0_i32 = arith.constant 0 : i32
    %c0_i32_0 = arith.constant 0 : i32
    %c0_i32_1 = arith.constant 0 : i32
    return %c0_i32, %c0_i32_0 : i32, i32
  }
  func.func @transform_3(%arg0: i32) -> (i32, i32, i32) {
    %c0_i32 = arith.constant 0 : i32
    %c0_i32_0 = arith.constant 0 : i32
    %c0_i32_1 = arith.constant 0 : i32
    return %arg0, %c0_i32, %c0_i32_0 : i32, i32, i32
  }
}

module attributes {stable_mosaic.version = 11 : i64} {
  func.func @_mlp_head_kernel(%arg0: i32, %arg1: memref<8x512xbf16, #tpu.memory_space<vmem>>, %arg2: memref<512x512xbf16, #tpu.memory_space<vmem>>, %arg3: memref<1x512xf32, #tpu.memory_space<vmem>>, %arg4: memref<512x256xbf16, #tpu.memory_space<vmem>>, %arg5: memref<1x256xf32, #tpu.memory_space<vmem>>, %arg6: memref<256x128xbf16, #tpu.memory_space<vmem>>, %arg7: memref<1x128xf32, #tpu.memory_space<vmem>>, %arg8: memref<8x128xf32, #tpu.memory_space<vmem>>, %arg9: memref<8x512xf32, #tpu.memory_space<vmem>>) attributes {dimension_semantics = [#tpu.dimension_semantics<arbitrary>], iteration_bounds = array<i64: 4>, scalar_prefetch = 0 : i64, scratch_operands = 1 : i64, tpu.core_type = #tpu.core_type<tc>, window_params = [{transform_indices = @transform_0, window_bounds = array<i64: 8, 512>}, {transform_indices = @transform_1, window_bounds = array<i64: 512, 512>}, {pipeline_mode = #tpu.pipeline_mode<synchronous>, transform_indices = @transform_2, window_bounds = array<i64: 1, 512>}, {pipeline_mode = #tpu.pipeline_mode<synchronous>, transform_indices = @transform_3, window_bounds = array<i64: 512, 256>}, {pipeline_mode = #tpu.pipeline_mode<synchronous>, transform_indices = @transform_4, window_bounds = array<i64: 1, 256>}, {pipeline_mode = #tpu.pipeline_mode<synchronous>, transform_indices = @transform_5, window_bounds = array<i64: 256, 128>}, {pipeline_mode = #tpu.pipeline_mode<synchronous>, transform_indices = @transform_6, window_bounds = array<i64: 1, 128>}, {pipeline_mode = #tpu.pipeline_mode<synchronous>, transform_indices = @transform_7, window_bounds = array<i64: 8, 128>}]} {
    %c0_i32 = arith.constant 0 : i32
    %0 = arith.cmpi eq, %arg0, %c0_i32 : i32
    %1 = arith.extui %0 : i1 to i32
    %c0_i32_0 = arith.constant 0 : i32
    %2 = arith.cmpi ne, %1, %c0_i32_0 : i32
    scf.if %2 {
      %cst_9 = arith.constant 0.000000e+00 : f32
      %12 = vector.broadcast %cst_9 : f32 to vector<8x512xf32>
      %c0_10 = arith.constant 0 : index
      %c0_11 = arith.constant 0 : index
      %13 = vector.load %arg9[%c0_10, %c0_11] : memref<8x512xf32, #tpu.memory_space<vmem>>, vector<8x512xf32>
      tpu.vector_store %arg9[%c0_10, %c0_11], %12 {strides = array<i32>} : memref<8x512xf32, #tpu.memory_space<vmem>>, vector<8x512xf32>,
    } else {
    }
    %c0 = arith.constant 0 : index
    %c0_1 = arith.constant 0 : index
    %3 = vector.load %arg9[%c0, %c0_1] : memref<8x512xf32, #tpu.memory_space<vmem>>, vector<8x512xf32>
    %c0_2 = arith.constant 0 : index
    %c0_3 = arith.constant 0 : index
    %4 = vector.load %arg1[%c0_2, %c0_3] : memref<8x512xbf16, #tpu.memory_space<vmem>>, vector<8x512xbf16>
    %c0_4 = arith.constant 0 : index
    %c0_5 = arith.constant 0 : index
    %5 = vector.load %arg2[%c0_4, %c0_5] : memref<512x512xbf16, #tpu.memory_space<vmem>>, vector<512x512xbf16>
    %cst = arith.constant dense<0.000000e+00> : vector<8x512xf32>
    %6 = tpu.matmul %4, %5, %cst {dimension_numbers = #tpu.dot_dimension_numbers<[1], [0], [0], [1], [0, 0, 1, 1], [], []>} : vector<8x512xbf16>, vector<512x512xbf16>, vector<8x512xf32> -> vector<8x512xf32>
    %7 = arith.addf %3, %6 : vector<8x512xf32>
    %c0_6 = arith.constant 0 : index
    %c0_7 = arith.constant 0 : index
    %8 = vector.load %arg9[%c0_6, %c0_7] : memref<8x512xf32, #tpu.memory_space<vmem>>, vector<8x512xf32>
    tpu.vector_store %arg9[%c0_6, %c0_7], %7 {strides = array<i32>} : memref<8x512xf32, #tpu.memory_space<vmem>>, vector<8x512xf32>,
    %c3_i32 = arith.constant 3 : i32
    %9 = arith.cmpi eq, %arg0, %c3_i32 : i32
    %10 = arith.extui %9 : i1 to i32
    %c0_i32_8 = arith.constant 0 : i32
    %11 = arith.cmpi ne, %10, %c0_i32_8 : i32
    scf.if %11 {
      %c0_9 = arith.constant 0 : index
      %c0_10 = arith.constant 0 : index
      %12 = vector.load %arg9[%c0_9, %c0_10] : memref<8x512xf32, #tpu.memory_space<vmem>>, vector<8x512xf32>
      %c0_11 = arith.constant 0 : index
      %c0_12 = arith.constant 0 : index
      %13 = vector.load %arg3[%c0_11, %c0_12] : memref<1x512xf32, #tpu.memory_space<vmem>>, vector<1x512xf32>
      %14 = vector.broadcast %13 : vector<1x512xf32> to vector<8x512xf32>
      %15 = arith.addf %12, %14 : vector<8x512xf32>
      %cst_13 = arith.constant 0.000000e+00 : f32
      %16 = vector.broadcast %cst_13 : f32 to vector<8x512xf32>
      %17 = arith.maximumf %15, %16 : vector<8x512xf32>
      %18 = arith.truncf %17 : vector<8x512xf32> to vector<8x512xbf16>
      %c0_14 = arith.constant 0 : index
      %c0_15 = arith.constant 0 : index
      %19 = vector.load %arg4[%c0_14, %c0_15] : memref<512x256xbf16, #tpu.memory_space<vmem>>, vector<512x256xbf16>
      %cst_16 = arith.constant dense<0.000000e+00> : vector<8x256xf32>
      %20 = tpu.matmul %18, %19, %cst_16 {dimension_numbers = #tpu.dot_dimension_numbers<[1], [0], [0], [1], [0, 0, 1, 1], [], []>} : vector<8x512xbf16>, vector<512x256xbf16>, vector<8x256xf32> -> vector<8x256xf32>
      %c0_17 = arith.constant 0 : index
      %c0_18 = arith.constant 0 : index
      %21 = vector.load %arg5[%c0_17, %c0_18] : memref<1x256xf32, #tpu.memory_space<vmem>>, vector<1x256xf32>
      %22 = vector.broadcast %21 : vector<1x256xf32> to vector<8x256xf32>
      %23 = arith.addf %20, %22 : vector<8x256xf32>
      %cst_19 = arith.constant 0.000000e+00 : f32
      %24 = vector.broadcast %cst_19 : f32 to vector<8x256xf32>
      %25 = arith.maximumf %23, %24 : vector<8x256xf32>
      %26 = arith.truncf %25 : vector<8x256xf32> to vector<8x256xbf16>
      %c0_20 = arith.constant 0 : index
      %c0_21 = arith.constant 0 : index
      %27 = vector.load %arg6[%c0_20, %c0_21] : memref<256x128xbf16, #tpu.memory_space<vmem>>, vector<256x128xbf16>
      %cst_22 = arith.constant dense<0.000000e+00> : vector<8x128xf32>
      %28 = tpu.matmul %26, %27, %cst_22 {dimension_numbers = #tpu.dot_dimension_numbers<[1], [0], [0], [1], [0, 0, 1, 1], [], []>} : vector<8x256xbf16>, vector<256x128xbf16>, vector<8x128xf32> -> vector<8x128xf32>
      %c0_23 = arith.constant 0 : index
      %c0_24 = arith.constant 0 : index
      %29 = vector.load %arg7[%c0_23, %c0_24] : memref<1x128xf32, #tpu.memory_space<vmem>>, vector<1x128xf32>
      %30 = vector.broadcast %29 : vector<1x128xf32> to vector<8x128xf32>
      %31 = arith.addf %28, %30 : vector<8x128xf32>
      %c0_25 = arith.constant 0 : index
      %c0_26 = arith.constant 0 : index
      %32 = vector.load %arg8[%c0_25, %c0_26] : memref<8x128xf32, #tpu.memory_space<vmem>>, vector<8x128xf32>
      tpu.vector_store %arg8[%c0_25, %c0_26], %31 {strides = array<i32>} : memref<8x128xf32, #tpu.memory_space<vmem>>, vector<8x128xf32>,
    } else {
    }
    return
  }
  func.func @transform_0(%arg0: i32) -> (i32, i32) {
    %c0_i32 = arith.constant 0 : i32
    %c0_i32_0 = arith.constant 0 : i32
    return %c0_i32, %arg0 : i32, i32
  }
  func.func @transform_1(%arg0: i32) -> (i32, i32) {
    %c0_i32 = arith.constant 0 : i32
    %c0_i32_0 = arith.constant 0 : i32
    return %arg0, %c0_i32 : i32, i32
  }
  func.func @transform_2(%arg0: i32) -> (i32, i32) {
    %c0_i32 = arith.constant 0 : i32
    %c0_i32_0 = arith.constant 0 : i32
    %c0_i32_1 = arith.constant 0 : i32
    return %c0_i32, %c0_i32_0 : i32, i32
  }
  func.func @transform_3(%arg0: i32) -> (i32, i32) {
    %c0_i32 = arith.constant 0 : i32
    %c0_i32_0 = arith.constant 0 : i32
    %c0_i32_1 = arith.constant 0 : i32
    return %c0_i32, %c0_i32_0 : i32, i32
  }
  func.func @transform_4(%arg0: i32) -> (i32, i32) {
    %c0_i32 = arith.constant 0 : i32
    %c0_i32_0 = arith.constant 0 : i32
    %c0_i32_1 = arith.constant 0 : i32
    return %c0_i32, %c0_i32_0 : i32, i32
  }
  func.func @transform_5(%arg0: i32) -> (i32, i32) {
    %c0_i32 = arith.constant 0 : i32
    %c0_i32_0 = arith.constant 0 : i32
    %c0_i32_1 = arith.constant 0 : i32
    return %c0_i32, %c0_i32_0 : i32, i32
  }
  func.func @transform_6(%arg0: i32) -> (i32, i32) {
    %c0_i32 = arith.constant 0 : i32
    %c0_i32_0 = arith.constant 0 : i32
    %c0_i32_1 = arith.constant 0 : i32
    return %c0_i32, %c0_i32_0 : i32, i32
  }
  func.func @transform_7(%arg0: i32) -> (i32, i32) {
    %c0_i32 = arith.constant 0 : i32
    %c0_i32_0 = arith.constant 0 : i32
    %c0_i32_1 = arith.constant 0 : i32
    return %c0_i32, %c0_i32_0 : i32, i32
  }
}

</mosaic_0001>

<llo_original>
// kernel: a_call__.2
$region0: #{a_call__.2}
  #allocation0 [shape = 'u32[]', space=smem, size = 0x4, offset = 0x4, fixed_abs, tag = 'smem constant byte address 0x4 - core index']
  #allocation1 [shape = 'u32[144,128]{1,0:T(1,128)}', space=vmem, size = 0x12000, scoped, tag = 'internal scratch']
  %s0 = inlined_call_operand.vmem [shape: f32[8,18,64], index: 0, kind: input, shape index: {}]
  %s1 = inlined_call_operand.hbm [shape: bf16[3,64,128], index: 1, kind: input, shape index: {}]
  %s2 = inlined_call_operand.hbm [shape: f32[1,128], index: 2, kind: input, shape index: {}]
  %s3 = inlined_call_operand.vmem [shape: bf16[8,16,128], index: 3, kind: output, shape index: {}]
  %s4 = sld [smem:[#allocation0]]
  $region53: #{a_call__.2} parent=0
    _
  %s6 = ssub.s32 1, %s4
  %s7 = scalar_select 0, %s6, %s4
  $region1: #{a_call__.2} parent=0
    #allocation2 [shape = 'u8[49152]{0}', space=vmem, size = 0xc000, scoped, tag = 'input window, operand 1, single buffered']
    #allocation3 [shape = 's32[2]{0}', space=sflag, size = 0x8, scoped, tag = 'scoped memory for a_call__.2']
    #allocation4 [shape = 'u8[512]{0}', space=vmem, size = 0x400, scoped, tag = 'input window, operand 2, single buffered']
    #allocation5 [shape = 's32[1]{0}', space=sflag, size = 0x4, scoped, tag = 'scoped memory for a_call__.2']
    %8 = vsyncpa [#allocation3], 0
    %9 = vsyncpa [#allocation5], 0
    loop: start=0, step=1, limit=10
    $region2: #{a_call__.2} parent=1 // loop_pre_header
      _
    $region3: #{a_call__.2} parent=1 // loop_header
      %s11 = sphi 0, %s15
      %p12 = scmp.ge.s32.totalorder %s11, 10
      %s21 = sphi 0, %s23
      %s24 = sphi 0, %s21
      %s25 = sphi 0, %s24
      %s41 = sphi 0, %s25
      %s45 = sphi 0, %s45
      %s47 = sphi 0, %s45
      %s48 = sphi 0, %s47
      %s62 = sphi 0, %s48
      %s66 = sphi 0, %s66
      %s68 = sphi 0, %s66
      %s69 = sphi 0, %s68
      %s83 = sphi 0, %s69
      %s89 = sphi 0, %s91
      %s92 = sphi 0, %s89
      %s93 = sphi 0, %s92
      %s109 = sphi 0, %s93
    $region4: #{a_call__.2} parent=1 // loop_header_branch
      %14 = sbr.rel (%p12) target = $region8
    $region5: #{a_call__.2} parent=1 // loop_body
      %s16 = ssub.s32 %s11, 1
      %s17 = ssub.s32 %s11, 2
      %s18 = sadd.s32 %s11, 1
      %s19 = ssub.s32 %s11, %s18
      %p20 = scmp.eq.s32.totalorder %s19, 0
      %s22 = sadd.s32 %s21, 1
      %s23 = scalar_select %p20, %s21, %s22
      %p26 = pneg %p20
      %p27 = scmp.eq.s32.totalorder %s11, 7
      %p28 = por %p26, %p27
      %p29 = scmp.ne.s32.totalorder %s21, %s24
      %p30 = scmp.eq.s32.totalorder %s11, 0
      %p31 = por %p29, %p30
      %p32 = scmp.ne.s32.totalorder %s21, %s24
      %p33 = scmp.eq.s32.totalorder %s16, 7
      %p34 = por %p32, %p33
      %p35 = scmp.ne.s32.totalorder %s24, %s25
      %p36 = scmp.eq.s32.totalorder %s16, 0
      %p37 = por %p35, %p36
      %p38 = scmp.ne.s32.totalorder %s24, %s25
      %p39 = scmp.eq.s32.totalorder %s17, 7
      %p40 = por %p38, %p39
      %p42 = scmp.ne.s32.totalorder %s25, %s41
      %p43 = scmp.eq.s32.totalorder %s17, 0
      %p44 = por %p42, %p43
      %s46 = sadd.s32 %s45, 1
      %p49 = scmp.eq.s32.totalorder %s11, 7
      %p50 = scmp.ne.s32.totalorder %s45, %s47
      %p51 = scmp.eq.s32.totalorder %s11, 0
      %p52 = por %p50, %p51
      %p53 = scmp.ne.s32.totalorder %s45, %s47
      %p54 = scmp.eq.s32.totalorder %s16, 7
      %p55 = por %p53, %p54
      %p56 = scmp.ne.s32.totalorder %s47, %s48
      %p57 = scmp.eq.s32.totalorder %s16, 0
      %p58 = por %p56, %p57
      %p59 = scmp.ne.s32.totalorder %s47, %s48
      %p60 = scmp.eq.s32.totalorder %s17, 7
      %p61 = por %p59, %p60
      %p63 = scmp.ne.s32.totalorder %s48, %s62
      %p64 = scmp.eq.s32.totalorder %s17, 0
      %p65 = por %p63, %p64
      %s67 = sadd.s32 %s66, 1
      %p70 = scmp.eq.s32.totalorder %s11, 7
      %p71 = scmp.ne.s32.totalorder %s66, %s68
      %p72 = scmp.eq.s32.totalorder %s11, 0
      %p73 = por %p71, %p72
      %p74 = scmp.ne.s32.totalorder %s66, %s68
      %p75 = scmp.eq.s32.totalorder %s16, 7
      %p76 = por %p74, %p75
      %p77 = scmp.ne.s32.totalorder %s68, %s69
      %p78 = scmp.eq.s32.totalorder %s16, 0
      %p79 = por %p77, %p78
      %p80 = scmp.ne.s32.totalorder %s68, %s69
      %p81 = scmp.eq.s32.totalorder %s17, 7
      %p82 = por %p80, %p81
      %p84 = scmp.ne.s32.totalorder %s69, %s83
      %p85 = scmp.eq.s32.totalorder %s17, 0
      %p86 = por %p84, %p85
      %s87 = ssub.s32 %s11, %s18
      %p88 = scmp.eq.s32.totalorder %s87, 0
      %s90 = sadd.s32 %s89, 1
      %s91 = scalar_select %p88, %s89, %s90
      %p94 = pneg %p88
      %p95 = scmp.eq.s32.totalorder %s11, 7
      %p96 = por %p94, %p95
      %p97 = scmp.ne.s32.totalorder %s89, %s92
      %p98 = scmp.eq.s32.totalorder %s11, 0
      %p99 = por %p97, %p98
      %p100 = scmp.ne.s32.totalorder %s89, %s92
      %p101 = scmp.eq.s32.totalorder %s16, 7
      %p102 = por %p100, %p101
      %p103 = scmp.ne.s32.totalorder %s92, %s93
      %p104 = scmp.eq.s32.totalorder %s16, 0
      %p105 = por %p103, %p104
      %p106 = scmp.ne.s32.totalorder %s92, %s93
      %p107 = scmp.eq.s32.totalorder %s17, 7
      %p108 = por %p106, %p107
      %p110 = scmp.ne.s32.totalorder %s93, %s109
      %p111 = scmp.eq.s32.totalorder %s17, 0
      %p112 = por %p110, %p111
      %p113 = scmp.le.s32.totalorder 1, %s11
      %p114 = scmp.lt.s32.totalorder %s11, 9
      %p115 = pnand %p113, %p114
      %p116 = pneg %p115
      // Predicated region
      $region9: #{a_call__.2} parent=5 // pred_check
        _
      $region10: #{a_call__.2} parent=5 // pred_check_branch
        %118 = sbr.rel (%p115) target = $region12
      $region11: #{a_call__.2} parent=5 // pred_region
        %s119 = ssub.s32 %s11, 1
        // Predicated region
        $region13: #{a_call__.2} parent=11 // pred_check
          %p120 = pneg %p58
        $region14: #{a_call__.2} parent=11 // pred_check_branch
          %122 = sbr.rel (%p120) target = $region16
        $region15: #{a_call__.2} parent=11 // pred_region
          %s124 = ssub.s32 1536, 1536
          %125 = vsyncadd [#allocation3], %s124
          %s126 = sshll.u32 [#allocation2], 4
          %s127 = int_to_ptr.vmem [resolvable:$true] %s126
          %132 = dma.hbm_to_vmem [thread:$0]  %s1, 1536, %s127, [#allocation3], 64, 64, 4
        $region16: #{a_call__.2} parent=11 // pred_fallthru
          _
        // Predicated region
        $region17: #{a_call__.2} parent=11 // pred_check
          %p133 = pneg %p79
        $region18: #{a_call__.2} parent=11 // pred_check_branch
          %135 = sbr.rel (%p133) target = $region20
        $region19: #{a_call__.2} parent=11 // pred_region
          %s137 = ssub.s32 16, 16
          %138 = vsyncadd [#allocation5], %s137
          %s140 = sshll.u32 [#allocation4], 4
          %s141 = int_to_ptr.vmem [resolvable:$true] %s140
          %143 = dma.hbm_to_vmem [thread:$0]  %s2, 16, %s141, [#allocation5]
        $region20: #{a_call__.2} parent=11 // pred_fallthru
          _
      $region12: #{a_call__.2} parent=5 // pred_fallthru
        _
      %p144 = scmp.lt.s32.totalorder %s11, 8
      // Predicated region
      $region21: #{a_call__.2} parent=5 // pred_check
        %p145 = pneg %p144
      $region22: #{a_call__.2} parent=5 // pred_check_branch
        %147 = sbr.rel (%p145) target = $region24
      $region23: #{a_call__.2} parent=5 // pred_region
        // Predicated region
        $region25: #{a_call__.2} parent=23 // pred_check
          %p148 = pneg %p31
        $region26: #{a_call__.2} parent=23 // pred_check_branch
          %150 = sbr.rel (%p148) target = $region28
        $region27: #{a_call__.2} parent=23 // pred_region
          %p151 = scmp.lt.s32.totalorder %s11, 7
          %s152 = scalar_select %p151, %s11, 7
          %s153 = smul.addr %s152, 3
          %s154 = smul.addr %s153, 8
          %s155 = scalar_lea.vmem %s0, %s154
        $region28: #{a_call__.2} parent=23 // pred_fallthru
          _
      $region24: #{a_call__.2} parent=5 // pred_fallthru
        _
      %p156 = scmp.le.s32.totalorder 1, %s11
      %p157 = scmp.lt.s32.totalorder %s11, 9
      %p158 = pnand %p156, %p157
      %p159 = pneg %p158
      // Predicated region
      $region29: #{a_call__.2} parent=5 // pred_check
        _
      $region30: #{a_call__.2} parent=5 // pred_check_branch
        %161 = sbr.rel (%p158) target = $region32
      $region31: #{a_call__.2} parent=5 // pred_region
        %s162 = ssub.s32 %s11, 1
        // Predicated region
        $region33: #{a_call__.2} parent=31 // pred_check
          %p163 = pneg %p58
        $region34: #{a_call__.2} parent=31 // pred_check_branch
          %165 = sbr.rel (%p163) target = $region36
        $region35: #{a_call__.2} parent=31 // pred_region
          %166 = dma.done [#allocation3], 1536
        $region36: #{a_call__.2} parent=31 // pred_fallthru
          _
        // Predicated region
        $region37: #{a_call__.2} parent=31 // pred_check
          %p167 = pneg %p79
        $region38: #{a_call__.2} parent=31 // pred_check_branch
          %169 = sbr.rel (%p167) target = $region40
        $region39: #{a_call__.2} parent=31 // pred_region
          %170 = dma.done [#allocation5], 16
        $region40: #{a_call__.2} parent=31 // pred_fallthru
          _
        %p171 = scmp.lt.s32.totalorder %s16, 7
        %s172 = scalar_select %p171, %s16, 7
        %s173 = smul.addr %s172, 3
        %s174 = smul.addr %s173, 8
        %s175 = scalar_lea.vmem %s0, %s174
        %p176 = pneg %p37
        %p177 = pneg %p34
        %p178 = pneg %p58
        %p179 = pneg %p55
        %p180 = pneg %p79
        %p181 = pneg %p76
        %p182 = pneg %p105
        %p183 = pneg %p102
        %p184 = scmp.lt.s32.totalorder %s16, 7
        %s185 = scalar_select %p184, %s16, 7
        %s186 = smul.addr %s185, 2
        %s187 = smul.addr %s186, 4
        %s188 = scalar_lea.vmem %s3, %s187
        %p189 = scmp.lt.s32.totalorder %s16, 7
        %s190 = scalar_select %p189, %s16, 7
        %s191 = smul.addr %s190, 3
        %s192 = smul.addr %s191, 8
        %s193 = scalar_lea.vmem %s0, %s192
        %p194 = scmp.lt.s32.totalorder %s16, 7
        %s195 = scalar_select %p194, %s16, 7
        %s196 = smul.addr %s195, 2
        %s197 = smul.addr %s196, 4
        %s198 = scalar_lea.vmem %s3, %s197
        %v200 = vld [vmem:[%s193] sm:$0xff]
        %v201 = vld [vmem:[%s193 + $0x8] sm:$0xff]
        %v202 = vld [vmem:[%s193 + $0x10] sm:$0x3]
        %v203 = vpack.c.bf16 %v201, %v200
        %v204 = vld [vmem:[#allocation2] sm:$0xf]
        %v205 = vld [vmem:[#allocation2 + $0x4] sm:$0xf]
        %v206 = vld [vmem:[#allocation2 + $0x8] sm:$0xf]
        %v207 = vld [vmem:[#allocation2 + $0xc] sm:$0xf]
        %v208 = vld [vmem:[#allocation2 + $0x10] sm:$0xf]
        %v209 = vld [vmem:[#allocation2 + $0x14] sm:$0xf]
        %v210 = vld [vmem:[#allocation2 + $0x18] sm:$0xf]
        %v211 = vld [vmem:[#allocation2 + $0x1c] sm:$0xf]
        %v212 = vpack.c.bf16 %v202, %v202
        %s213 = scalar_lea.vmem [#allocation2], 32
        %v214 = vld [vmem:[%s213] sm:$0xf]
        %v215 = vld [vmem:[%s213 + $0x4] sm:$0xf]
        %v216 = vld [vmem:[%s213 + $0x8] sm:$0xf]
        %v217 = vld [vmem:[%s213 + $0xc] sm:$0xf]
        %v218 = vld [vmem:[%s213 + $0x10] sm:$0xf]
        %v219 = vld [vmem:[%s213 + $0x14] sm:$0xf]
        %v220 = vld [vmem:[%s213 + $0x18] sm:$0xf]
        %v221 = vld [vmem:[%s213 + $0x1c] sm:$0xf]
        %vm222 = vsmask.f32 7424
        %v224 = vshrl.u32 %v203, 16
        %v226 = vshll.u32 %v203, 16
        %v228 = vrot.slane %v226, 1
        %v229 = vor.u32 %v224, %v228
        %v231 = vshll.u32 %v212, 16
        %v233 = vrot.slane %v231, 1
        %v234 = vsel %vm222, %v229, %v233
        %v243 = vunpack.c.l.b16 %v214
        %v244 = vunpack.c.l.b16 %v215
        %v245 = vunpack.c.l.b16 %v216
        %v246 = vunpack.c.l.b16 %v217
        %v247 = vunpack.c.l.b16 %v218
        %v248 = vunpack.c.l.b16 %v219
        %v249 = vunpack.c.l.b16 %v220
        %v250 = vunpack.c.l.b16 %v221
        %v251 = vpack.c.b16 %v244, %v243
        %v252 = vpack.c.b16 %v246, %v245
        %v253 = vpack.c.b16 %v248, %v247
        %v254 = vpack.c.b16 %v250, %v249
        %vm259 = vcmask 523264
        %v261 = vsel %vm259, %v234, 0
        %263 = vmatprep.subr.bf16.mxu0 0
        %264 = vmatpush1.bf16.msra.mxu0 %v251
        %265 = vmatprep.subr.bf16.mxu0 0
        %266 = vmatpush1.bf16.msra.mxu0 %v252
        %267 = vmatprep.subr.bf16.mxu0 0
        %268 = vmatpush1.bf16.msra.mxu0 %v253
        %269 = vmatprep.subr.bf16.mxu0 0
        %270 = vmatpush1.bf16.msra.mxu0 %v254
        %271 = vmatprep.subr.bf16.mxu0 0
        %272 = vmatpush1.bf16.msra.mxu0 0
        %273 = vmatprep.subr.bf16.mxu0 0
        %274 = vmatpush1.bf16.msra.mxu0 0
        %275 = vmatprep.subr.bf16.mxu0 0
        %276 = vmatpush1.bf16.msra.mxu0 0
        %277 = vmatprep.subr.bf16.mxu0 0
        %278 = vmatpush1.bf16.msra.mxu0 0
        %279 = vmatprep.subr.bf16.mxu0 0
        %280 = vmatpush1.bf16.msra.mxu0 0
        %281 = vmatprep.subr.bf16.mxu0 0
        %282 = vmatpush1.bf16.msra.mxu0 0
        %283 = vmatprep.subr.bf16.mxu0 0
        %284 = vmatpush1.bf16.msra.mxu0 0
        %285 = vmatprep.subr.bf16.mxu0 0
        %286 = vmatpush1.bf16.msra.mxu0 0
        %287 = vmatprep.subr.bf16.mxu0 0
        %288 = vmatpush1.bf16.msra.mxu0 0
        %289 = vmatprep.subr.bf16.mxu0 0
        %290 = vmatpush1.bf16.msra.mxu0 0
        %291 = vmatprep.subr.bf16.mxu0 0
        %292 = vmatpush1.bf16.msra.mxu0 0
        %293 = vmatprep.subr.bf16.mxu0 0
        %294 = vmatpush1.bf16.msra.mxu0 0
        %295 = vmatprep.mubr.bf16.mxu0 0
        %296 = vmatmul.mubr.bf16.gmra.mrb[0].mxu0 %v261
        %v297 = vpop.f32.mrb[0].mxu0
        %v298 = vadd.f32 0.0, %v297
        %v299 = vpop.f32.mrb[0].mxu0
        %v300 = vpop.f32.mrb[0].mxu0
        %v301 = vadd.f32 0.0, %v300
        %v302 = vpop.f32.mrb[0].mxu0
        %303 = vdwg.mxu0
        %v312 = vunpack.c.l.b16 %v204
        %v313 = vunpack.c.l.b16 %v205
        %v314 = vunpack.c.l.b16 %v206
        %v315 = vunpack.c.l.b16 %v207
        %v316 = vunpack.c.l.b16 %v208
        %v317 = vunpack.c.l.b16 %v209
        %v318 = vunpack.c.l.b16 %v210
        %v319 = vunpack.c.l.b16 %v211
        %v320 = vpack.c.b16 %v313, %v312
        %v321 = vpack.c.b16 %v315, %v314
        %v322 = vpack.c.b16 %v317, %v316
        %v323 = vpack.c.b16 %v319, %v318
        %v328 = vsel %vm259, %v203, 0
        %330 = vmatprep.subr.bf16.mxu0 0
        %331 = vmatpush1.bf16.msra.mxu0 %v320
        %332 = vmatprep.subr.bf16.mxu0 0
        %333 = vmatpush1.bf16.msra.mxu0 %v321
        %334 = vmatprep.subr.bf16.mxu0 0
        %335 = vmatpush1.bf16.msra.mxu0 %v322
        %336 = vmatprep.subr.bf16.mxu0 0
        %337 = vmatpush1.bf16.msra.mxu0 %v323
        %338 = vmatprep.subr.bf16.mxu0 0
        %339 = vmatpush1.bf16.msra.mxu0 0
        %340 = vmatprep.subr.bf16.mxu0 0
        %341 = vmatpush1.bf16.msra.mxu0 0
        %342 = vmatprep.subr.bf16.mxu0 0
        %343 = vmatpush1.bf16.msra.mxu0 0
        %344 = vmatprep.subr.bf16.mxu0 0
        %345 = vmatpush1.bf16.msra.mxu0 0
        %346 = vmatprep.subr.bf16.mxu0 0
        %347 = vmatpush1.bf16.msra.mxu0 0
        %348 = vmatprep.subr.bf16.mxu0 0
        %349 = vmatpush1.bf16.msra.mxu0 0
        %350 = vmatprep.subr.bf16.mxu0 0
        %351 = vmatpush1.bf16.msra.mxu0 0
        %352 = vmatprep.subr.bf16.mxu0 0
        %353 = vmatpush1.bf16.msra.mxu0 0
        %354 = vmatprep.subr.bf16.mxu0 0
        %355 = vmatpush1.bf16.msra.mxu0 0
        %356 = vmatprep.subr.bf16.mxu0 0
        %357 = vmatpush1.bf16.msra.mxu0 0
        %358 = vmatprep.subr.bf16.mxu0 0
        %359 = vmatpush1.bf16.msra.mxu0 0
        %360 = vmatprep.subr.bf16.mxu0 0
        %361 = vmatpush1.bf16.msra.mxu0 0
        %362 = vmatprep.mubr.bf16.mxu0 0
        %363 = vmatmul.mubr.bf16.gmra.mrb[0].mxu0 %v328
        %v364 = vpop.f32.mrb[0].mxu0
        %v365 = vadd.f32 %v298, %v364
        %v366 = vpop.f32.mrb[0].mxu0
        %v367 = vpop.f32.mrb[0].mxu0
        %v368 = vadd.f32 %v301, %v367
        %v369 = vpop.f32.mrb[0].mxu0
        %370 = vdwg.mxu0
        %s371 = scalar_lea.vmem [#allocation2], 64
        %v372 = vld [vmem:[%s371] sm:$0xf]
        %v373 = vld [vmem:[%s371 + $0x4] sm:$0xf]
        %v374 = vld [vmem:[%s371 + $0x8] sm:$0xf]
        %v375 = vld [vmem:[%s371 + $0xc] sm:$0xf]
        %v376 = vld [vmem:[%s371 + $0x10] sm:$0xf]
        %v377 = vld [vmem:[%s371 + $0x14] sm:$0xf]
        %v378 = vld [vmem:[%s371 + $0x18] sm:$0xf]
        %v379 = vld [vmem:[%s371 + $0x1c] sm:$0xf]
        %vm382 = vcmask 1046528
        %v383 = vrot.slane %v203, 1
        %v384 = vrot.slane %v212, 1
        %v385 = vsel %vm382, %v383, %v384
        %v394 = vunpack.c.l.b16 %v372
        %v395 = vunpack.c.l.b16 %v373
        %v396 = vunpack.c.l.b16 %v374
        %v397 = vunpack.c.l.b16 %v375
        %v398 = vunpack.c.l.b16 %v376
        %v399 = vunpack.c.l.b16 %v377
        %v400 = vunpack.c.l.b16 %v378
        %v401 = vunpack.c.l.b16 %v379
        %v402 = vpack.c.b16 %v395, %v394
        %v403 = vpack.c.b16 %v397, %v396
        %v404 = vpack.c.b16 %v399, %v398
        %v405 = vpack.c.b16 %v401, %v400
        %v411 = vsel %vm259, %v385, 0
        %413 = vmatprep.subr.bf16.mxu0 0
        %414 = vmatpush1.bf16.msra.mxu0 %v402
        %415 = vmatprep.subr.bf16.mxu0 0
        %416 = vmatpush1.bf16.msra.mxu0 %v403
        %417 = vmatprep.subr.bf16.mxu0 0
        %418 = vmatpush1.bf16.msra.mxu0 %v404
        %419 = vmatprep.subr.bf16.mxu0 0
        %420 = vmatpush1.bf16.msra.mxu0 %v405
        %421 = vmatprep.subr.bf16.mxu0 0
        %422 = vmatpush1.bf16.msra.mxu0 0
        %423 = vmatprep.subr.bf16.mxu0 0
        %424 = vmatpush1.bf16.msra.mxu0 0
        %425 = vmatprep.subr.bf16.mxu0 0
        %426 = vmatpush1.bf16.msra.mxu0 0
        %427 = vmatprep.subr.bf16.mxu0 0
        %428 = vmatpush1.bf16.msra.mxu0 0
        %429 = vmatprep.subr.bf16.mxu0 0
        %430 = vmatpush1.bf16.msra.mxu0 0
        %431 = vmatprep.subr.bf16.mxu0 0
        %432 = vmatpush1.bf16.msra.mxu0 0
        %433 = vmatprep.subr.bf16.mxu0 0
        %434 = vmatpush1.bf16.msra.mxu0 0
        %435 = vmatprep.subr.bf16.mxu0 0
        %436 = vmatpush1.bf16.msra.mxu0 0
        %437 = vmatprep.subr.bf16.mxu0 0
        %438 = vmatpush1.bf16.msra.mxu0 0
        %439 = vmatprep.subr.bf16.mxu0 0
        %440 = vmatpush1.bf16.msra.mxu0 0
        %441 = vmatprep.subr.bf16.mxu0 0
        %442 = vmatpush1.bf16.msra.mxu0 0
        %443 = vmatprep.subr.bf16.mxu0 0
        %444 = vmatpush1.bf16.msra.mxu0 0
        %445 = vmatprep.mubr.bf16.mxu0 0
        %446 = vmatmul.mubr.bf16.gmra.mrb[0].mxu0 %v411
        %v447 = vpop.f32.mrb[0].mxu0
        %v448 = vadd.f32 0.0, %v447
        %v449 = vpop.f32.mrb[0].mxu0
        %v450 = vpop.f32.mrb[0].mxu0
        %v451 = vadd.f32 0.0, %v450
        %v452 = vpop.f32.mrb[0].mxu0
        %453 = vdwg.mxu0
        %v454 = vadd.f32 %v365, %v448
        %v455 = vadd.f32 %v368, %v451
        %v456 = vld [vmem:[#allocation4] sm:$0x1]
        %v458 = vlaneseq
        %v459 = vshrl.u32 %v458, 7
        %v460 = vsub.s32 0, %v459
        %v461 = vrot.slane %v456, %v460
        %v463 = vadd.f32 %v454, %v461
        %v464 = vadd.f32 %v455, %v461
        %v465 = vmax.f32 %v463, 0.0
        %v466 = vmax.f32 %v464, 0.0
        %v467 = vpack.c.bf16 %v466, %v465
        %v469 = vunpack.c.l.b16 %v467
        %v470 = vunpack.c.h.b16 %v467
        %v471 = vpack.c.b16 %v469, %v469
        %v472 = vpack.c.b16 %v470, %v470
        %475 = vst [vmem:[%s198] sm:$0xf] %v471
        %476 = vst [vmem:[%s198 + $0x4] sm:$0xf] %v472
        %p477 = scmp.lt.s32.totalorder %s16, 7
        %s478 = scalar_select %p477, %s16, 7
        %s479 = smul.addr %s478, 2
        %s480 = smul.addr %s479, 4
        %s481 = scalar_lea.vmem %s3, %s480
        // Predicated region
        $region41: #{a_call__.2} parent=31 // pred_check
          %p482 = pneg %p102
        $region42: #{a_call__.2} parent=31 // pred_check_branch
          %484 = sbr.rel (%p482) target = $region44
        $region43: #{a_call__.2} parent=31 // pred_region
          _
        $region44: #{a_call__.2} parent=31 // pred_fallthru
          _
      $region32: #{a_call__.2} parent=5 // pred_fallthru
        _
      %p485 = scmp.le.s32.totalorder 2, %s11
      // Predicated region
      $region45: #{a_call__.2} parent=5 // pred_check
        %p486 = pneg %p485
      $region46: #{a_call__.2} parent=5 // pred_check_branch
        %488 = sbr.rel (%p486) target = $region48
      $region47: #{a_call__.2} parent=5 // pred_region
        %s489 = ssub.s32 %s11, 2
        // Predicated region
        $region49: #{a_call__.2} parent=47 // pred_check
          %p490 = pneg %p108
        $region50: #{a_call__.2} parent=47 // pred_check_branch
          %492 = sbr.rel (%p490) target = $region52
        $region51: #{a_call__.2} parent=47 // pred_region
          %p493 = scmp.lt.s32.totalorder %s17, 7
          %s494 = scalar_select %p493, %s17, 7
          %s495 = smul.addr %s494, 2
          %s496 = smul.addr %s495, 4
          %s497 = scalar_lea.vmem %s3, %s496
        $region52: #{a_call__.2} parent=47 // pred_fallthru
          _
      $region48: #{a_call__.2} parent=5 // pred_fallthru
        _
    $region6: #{a_call__.2} parent=1 // loop_footer
      %s15 = sadd.s32 1, %s11
    $region7: #{a_call__.2} parent=1 // loop_footer_branch
      %10 = sbr.rel target = $region3
    $region8: #{a_call__.2} parent=1 // loop_exit
      _
    %498 = vsyncpa [#allocation3], 1
    %s499 = scalar_lea.sflag [#allocation3], 1
    %500 = vsyncpa %s499, 1
    %501 = vsyncpa [#allocation5], 1

// kernel: a_call__.3
$region0: #{a_call__.3}
  #allocation0 [shape = 'u32[]', space=smem, size = 0x4, offset = 0x4, fixed_abs, tag = 'smem constant byte address 0x4 - core index']
  #allocation1 [shape = 'u32[144,128]{1,0:T(1,128)}', space=vmem, size = 0x12000, scoped, tag = 'internal scratch']
  #allocation2 [shape = 'f32[8,512]{1,0:T(8,128)}', space=vmem, size = 0x4000, scoped, tag = 'scratch operand']
  %s0 = inlined_call_operand.vmem [shape: bf16[8,2048], index: 0, kind: input, shape index: {}]
  %s1 = inlined_call_operand.vmem [shape: bf16[2048,512], index: 1, kind: input, shape index: {}]
  %s2 = inlined_call_operand.vmem [shape: f32[1,512], index: 2, kind: input, shape index: {}]
  %s3 = inlined_call_operand.vmem [shape: bf16[512,256], index: 3, kind: input, shape index: {}]
  %s4 = inlined_call_operand.vmem [shape: f32[1,256], index: 4, kind: input, shape index: {}]
  %s5 = inlined_call_operand.vmem [shape: bf16[256,128], index: 5, kind: input, shape index: {}]
  %s6 = inlined_call_operand.vmem [shape: f32[1,128], index: 6, kind: input, shape index: {}]
  %s7 = inlined_call_operand.hbm [shape: f32[8,128], index: 7, kind: output, shape index: {}]
  %s8 = sld [smem:[#allocation0]]
  $region69: #{a_call__.3} parent=0
    _
  %s10 = ssub.s32 1, %s8
  %s11 = scalar_select 0, %s10, %s8
  $region1: #{a_call__.3} parent=0
    #allocation3 [shape = 'u8[4096]{0}', space=vmem, size = 0x1000, scoped, tag = 'output window, operand 0, single buffered']
    #allocation4 [shape = 's32[2]{0}', space=sflag, size = 0x8, scoped, tag = 'scoped memory for a_call__.3']
    %12 = vsyncpa [#allocation4], 0
    loop: start=0, step=1, limit=6
    $region2: #{a_call__.3} parent=1 // loop_pre_header
      _
    $region3: #{a_call__.3} parent=1 // loop_header
      %s14 = sphi 0, %s18
      %p15 = scmp.ge.s32.totalorder %s14, 6
      %s24 = sphi 0, %s26
      %s27 = sphi 0, %s24
      %s28 = sphi 0, %s27
      %s44 = sphi 0, %s28
      %s50 = sphi 0, %s52
      %s53 = sphi 0, %s50
      %s54 = sphi 0, %s53
      %s70 = sphi 0, %s54
      %s74 = sphi 0, %s74
      %s76 = sphi 0, %s74
      %s77 = sphi 0, %s76
      %s91 = sphi 0, %s77
      %s95 = sphi 0, %s95
      %s97 = sphi 0, %s95
      %s98 = sphi 0, %s97
      %s112 = sphi 0, %s98
      %s116 = sphi 0, %s116
      %s118 = sphi 0, %s116
      %s119 = sphi 0, %s118
      %s133 = sphi 0, %s119
      %s137 = sphi 0, %s137
      %s139 = sphi 0, %s137
      %s140 = sphi 0, %s139
      %s154 = sphi 0, %s140
      %s158 = sphi 0, %s158
      %s160 = sphi 0, %s158
      %s161 = sphi 0, %s160
      %s175 = sphi 0, %s161
      %s179 = sphi 0, %s179
      %s181 = sphi 0, %s179
      %s182 = sphi 0, %s181
      %s196 = sphi 0, %s182
    $region4: #{a_call__.3} parent=1 // loop_header_branch
      %17 = sbr.rel (%p15) target = $region8
    $region5: #{a_call__.3} parent=1 // loop_body
      %s19 = ssub.s32 %s14, 1
      %s20 = ssub.s32 %s14, 2
      %s21 = sadd.s32 %s14, 1
      %s22 = ssub.s32 %s14, %s21
      %p23 = scmp.eq.s32.totalorder %s22, 0
      %s25 = sadd.s32 %s24, 1
      %s26 = scalar_select %p23, %s24, %s25
      %p29 = pneg %p23
      %p30 = scmp.eq.s32.totalorder %s14, 3
      %p31 = por %p29, %p30
      %p32 = scmp.ne.s32.totalorder %s24, %s27
      %p33 = scmp.eq.s32.totalorder %s14, 0
      %p34 = por %p32, %p33
      %p35 = scmp.ne.s32.totalorder %s24, %s27
      %p36 = scmp.eq.s32.totalorder %s19, 3
      %p37 = por %p35, %p36
      %p38 = scmp.ne.s32.totalorder %s27, %s28
      %p39 = scmp.eq.s32.totalorder %s19, 0
      %p40 = por %p38, %p39
      %p41 = scmp.ne.s32.totalorder %s27, %s28
      %p42 = scmp.eq.s32.totalorder %s20, 3
      %p43 = por %p41, %p42
      %p45 = scmp.ne.s32.totalorder %s28, %s44
      %p46 = scmp.eq.s32.totalorder %s20, 0
      %p47 = por %p45, %p46
      %s48 = ssub.s32 %s14, %s21
      %p49 = scmp.eq.s32.totalorder %s48, 0
      %s51 = sadd.s32 %s50, 1
      %s52 = scalar_select %p49, %s50, %s51
      %p55 = pneg %p49
      %p56 = scmp.eq.s32.totalorder %s14, 3
      %p57 = por %p55, %p56
      %p58 = scmp.ne.s32.totalorder %s50, %s53
      %p59 = scmp.eq.s32.totalorder %s14, 0
      %p60 = por %p58, %p59
      %p61 = scmp.ne.s32.totalorder %s50, %s53
      %p62 = scmp.eq.s32.totalorder %s19, 3
      %p63 = por %p61, %p62
      %p64 = scmp.ne.s32.totalorder %s53, %s54
      %p65 = scmp.eq.s32.totalorder %s19, 0
      %p66 = por %p64, %p65
      %p67 = scmp.ne.s32.totalorder %s53, %s54
      %p68 = scmp.eq.s32.totalorder %s20, 3
      %p69 = por %p67, %p68
      %p71 = scmp.ne.s32.totalorder %s54, %s70
      %p72 = scmp.eq.s32.totalorder %s20, 0
      %p73 = por %p71, %p72
      %s75 = sadd.s32 %s74, 1
      %p78 = scmp.eq.s32.totalorder %s14, 3
      %p79 = scmp.ne.s32.totalorder %s74, %s76
      %p80 = scmp.eq.s32.totalorder %s14, 0
      %p81 = por %p79, %p80
      %p82 = scmp.ne.s32.totalorder %s74, %s76
      %p83 = scmp.eq.s32.totalorder %s19, 3
      %p84 = por %p82, %p83
      %p85 = scmp.ne.s32.totalorder %s76, %s77
      %p86 = scmp.eq.s32.totalorder %s19, 0
      %p87 = por %p85, %p86
      %p88 = scmp.ne.s32.totalorder %s76, %s77
      %p89 = scmp.eq.s32.totalorder %s20, 3
      %p90 = por %p88, %p89
      %p92 = scmp.ne.s32.totalorder %s77, %s91
      %p93 = scmp.eq.s32.totalorder %s20, 0
      %p94 = por %p92, %p93
      %s96 = sadd.s32 %s95, 1
      %p99 = scmp.eq.s32.totalorder %s14, 3
      %p100 = scmp.ne.s32.totalorder %s95, %s97
      %p101 = scmp.eq.s32.totalorder %s14, 0
      %p102 = por %p100, %p101
      %p103 = scmp.ne.s32.totalorder %s95, %s97
      %p104 = scmp.eq.s32.totalorder %s19, 3
      %p105 = por %p103, %p104
      %p106 = scmp.ne.s32.totalorder %s97, %s98
      %p107 = scmp.eq.s32.totalorder %s19, 0
      %p108 = por %p106, %p107
      %p109 = scmp.ne.s32.totalorder %s97, %s98
      %p110 = scmp.eq.s32.totalorder %s20, 3
      %p111 = por %p109, %p110
      %p113 = scmp.ne.s32.totalorder %s98, %s112
      %p114 = scmp.eq.s32.totalorder %s20, 0
      %p115 = por %p113, %p114
      %s117 = sadd.s32 %s116, 1
      %p120 = scmp.eq.s32.totalorder %s14, 3
      %p121 = scmp.ne.s32.totalorder %s116, %s118
      %p122 = scmp.eq.s32.totalorder %s14, 0
      %p123 = por %p121, %p122
      %p124 = scmp.ne.s32.totalorder %s116, %s118
      %p125 = scmp.eq.s32.totalorder %s19, 3
      %p126 = por %p124, %p125
      %p127 = scmp.ne.s32.totalorder %s118, %s119
      %p128 = scmp.eq.s32.totalorder %s19, 0
      %p129 = por %p127, %p128
      %p130 = scmp.ne.s32.totalorder %s118, %s119
      %p131 = scmp.eq.s32.totalorder %s20, 3
      %p132 = por %p130, %p131
      %p134 = scmp.ne.s32.totalorder %s119, %s133
      %p135 = scmp.eq.s32.totalorder %s20, 0
      %p136 = por %p134, %p135
      %s138 = sadd.s32 %s137, 1
      %p141 = scmp.eq.s32.totalorder %s14, 3
      %p142 = scmp.ne.s32.totalorder %s137, %s139
      %p143 = scmp.eq.s32.totalorder %s14, 0
      %p144 = por %p142, %p143
      %p145 = scmp.ne.s32.totalorder %s137, %s139
      %p146 = scmp.eq.s32.totalorder %s19, 3
      %p147 = por %p145, %p146
      %p148 = scmp.ne.s32.totalorder %s139, %s140
      %p149 = scmp.eq.s32.totalorder %s19, 0
      %p150 = por %p148, %p149
      %p151 = scmp.ne.s32.totalorder %s139, %s140
      %p152 = scmp.eq.s32.totalorder %s20, 3
      %p153 = por %p151, %p152
      %p155 = scmp.ne.s32.totalorder %s140, %s154
      %p156 = scmp.eq.s32.totalorder %s20, 0
      %p157 = por %p155, %p156
      %s159 = sadd.s32 %s158, 1
      %p162 = scmp.eq.s32.totalorder %s14, 3
      %p163 = scmp.ne.s32.totalorder %s158, %s160
      %p164 = scmp.eq.s32.totalorder %s14, 0
      %p165 = por %p163, %p164
      %p166 = scmp.ne.s32.totalorder %s158, %s160
      %p167 = scmp.eq.s32.totalorder %s19, 3
      %p168 = por %p166, %p167
      %p169 = scmp.ne.s32.totalorder %s160, %s161
      %p170 = scmp.eq.s32.totalorder %s19, 0
      %p171 = por %p169, %p170
      %p172 = scmp.ne.s32.totalorder %s160, %s161
      %p173 = scmp.eq.s32.totalorder %s20, 3
      %p174 = por %p172, %p173
      %p176 = scmp.ne.s32.totalorder %s161, %s175
      %p177 = scmp.eq.s32.totalorder %s20, 0
      %p178 = por %p176, %p177
      %s180 = sadd.s32 %s179, 1
      %p183 = scmp.eq.s32.totalorder %s14, 3
      %p184 = scmp.ne.s32.totalorder %s179, %s181
      %p185 = scmp.eq.s32.totalorder %s14, 0
      %p186 = por %p184, %p185
      %p187 = scmp.ne.s32.totalorder %s179, %s181
      %p188 = scmp.eq.s32.totalorder %s19, 3
      %p189 = por %p187, %p188
      %p190 = scmp.ne.s32.totalorder %s181, %s182
      %p191 = scmp.eq.s32.totalorder %s19, 0
      %p192 = por %p190, %p191
      %p193 = scmp.ne.s32.totalorder %s181, %s182
      %p194 = scmp.eq.s32.totalorder %s20, 3
      %p195 = por %p193, %p194
      %p197 = scmp.ne.s32.totalorder %s182, %s196
      %p198 = scmp.eq.s32.totalorder %s20, 0
      %p199 = por %p197, %p198
      %p200 = scmp.le.s32.totalorder 1, %s14
      %p201 = scmp.lt.s32.totalorder %s14, 5
      %p202 = pnand %p200, %p201
      %p203 = pneg %p202
      // Predicated region
      $region9: #{a_call__.3} parent=5 // pred_check
        _
      $region10: #{a_call__.3} parent=5 // pred_check_branch
        %205 = sbr.rel (%p202) target = $region12
      $region11: #{a_call__.3} parent=5 // pred_region
        %s206 = ssub.s32 %s14, 1
        // Predicated region
        $region13: #{a_call__.3} parent=11 // pred_check
          %p207 = pneg %p87
        $region14: #{a_call__.3} parent=11 // pred_check_branch
          %209 = sbr.rel (%p207) target = $region16
        $region15: #{a_call__.3} parent=11 // pred_region
          _
        $region16: #{a_call__.3} parent=11 // pred_fallthru
          _
        // Predicated region
        $region17: #{a_call__.3} parent=11 // pred_check
          %p210 = pneg %p108
        $region18: #{a_call__.3} parent=11 // pred_check_branch
          %212 = sbr.rel (%p210) target = $region20
        $region19: #{a_call__.3} parent=11 // pred_region
          _
        $region20: #{a_call__.3} parent=11 // pred_fallthru
          _
        // Predicated region
        $region21: #{a_call__.3} parent=11 // pred_check
          %p213 = pneg %p129
        $region22: #{a_call__.3} parent=11 // pred_check_branch
          %215 = sbr.rel (%p213) target = $region24
        $region23: #{a_call__.3} parent=11 // pred_region
          _
        $region24: #{a_call__.3} parent=11 // pred_fallthru
          _
        // Predicated region
        $region25: #{a_call__.3} parent=11 // pred_check
          %p216 = pneg %p150
        $region26: #{a_call__.3} parent=11 // pred_check_branch
          %218 = sbr.rel (%p216) target = $region28
        $region27: #{a_call__.3} parent=11 // pred_region
          _
        $region28: #{a_call__.3} parent=11 // pred_fallthru
          _
        // Predicated region
        $region29: #{a_call__.3} parent=11 // pred_check
          %p219 = pneg %p171
        $region30: #{a_call__.3} parent=11 // pred_check_branch
          %221 = sbr.rel (%p219) target = $region32
        $region31: #{a_call__.3} parent=11 // pred_region
          _
        $region32: #{a_call__.3} parent=11 // pred_fallthru
          _
      $region12: #{a_call__.3} parent=5 // pred_fallthru
        _
      %p222 = scmp.lt.s32.totalorder %s14, 4
      // Predicated region
      $region33: #{a_call__.3} parent=5 // pred_check
        %p223 = pneg %p222
      $region34: #{a_call__.3} parent=5 // pred_check_branch
        %225 = sbr.rel (%p223) target = $region36
      $region35: #{a_call__.3} parent=5 // pred_region
        // Predicated region
        $region37: #{a_call__.3} parent=35 // pred_check
          %p226 = pneg %p34
        $region38: #{a_call__.3} parent=35 // pred_check_branch
          %228 = sbr.rel (%p226) target = $region40
        $region39: #{a_call__.3} parent=35 // pred_region
          %s229 = smul.u32 4, %s14
          %p230 = scmp.lt.s32.totalorder %s229, 15
          %s231 = scalar_select %p230, %s229, 15
          %s232 = smul.addr %s231, 4
          %s233 = scalar_lea.vmem %s0, %s232
          %s234 = smul.u32 4, %s14
        $region40: #{a_call__.3} parent=35 // pred_fallthru
          _
        // Predicated region
        $region41: #{a_call__.3} parent=35 // pred_check
          %p235 = pneg %p60
        $region42: #{a_call__.3} parent=35 // pred_check_branch
          %237 = sbr.rel (%p235) target = $region44
        $region43: #{a_call__.3} parent=35 // pred_region
          %s238 = smul.u32 64, %s14
          %p239 = scmp.lt.s32.totalorder %s238, 255
          %s240 = scalar_select %p239, %s238, 255
          %s241 = smul.addr %s240, 4
          %s242 = smul.addr %s241, 4
          %s243 = scalar_lea.vmem %s1, %s242
          %s244 = smul.u32 64, %s14
        $region44: #{a_call__.3} parent=35 // pred_fallthru
          _
      $region36: #{a_call__.3} parent=5 // pred_fallthru
        _
      %p245 = scmp.le.s32.totalorder 1, %s14
      %p246 = scmp.lt.s32.totalorder %s14, 5
      %p247 = pnand %p245, %p246
      %p248 = pneg %p247
      // Predicated region
      $region45: #{a_call__.3} parent=5 // pred_check
        _
      $region46: #{a_call__.3} parent=5 // pred_check_branch
        %250 = sbr.rel (%p247) target = $region48
      $region47: #{a_call__.3} parent=5 // pred_region
        %s251 = ssub.s32 %s14, 1
        %s252 = smul.u32 4, %s19
        %p253 = scmp.lt.s32.totalorder %s252, 15
        %s254 = scalar_select %p253, %s252, 15
        %s255 = smul.addr %s254, 4
        %s256 = scalar_lea.vmem %s0, %s255
        %p257 = pneg %p40
        %p258 = pneg %p37
        %s259 = smul.u32 64, %s19
        %p260 = scmp.lt.s32.totalorder %s259, 255
        %s261 = scalar_select %p260, %s259, 255
        %s262 = smul.addr %s261, 4
        %s263 = smul.addr %s262, 4
        %s264 = scalar_lea.vmem %s1, %s263
        %p265 = pneg %p66
        %p266 = pneg %p63
        %p267 = pneg %p87
        %p268 = pneg %p84
        %p269 = pneg %p108
        %p270 = pneg %p105
        %p271 = pneg %p129
        %p272 = pneg %p126
        %p273 = pneg %p150
        %p274 = pneg %p147
        %p275 = pneg %p171
        %p276 = pneg %p168
        %p277 = pneg %p192
        %p278 = pneg %p189
        %s279 = smul.u32 4, %s19
        %p280 = scmp.lt.s32.totalorder %s279, 15
        %s281 = scalar_select %p280, %s279, 15
        %s282 = smul.addr %s281, 4
        %s283 = scalar_lea.vmem %s0, %s282
        %s284 = smul.u32 4, %s19
        %s285 = smul.u32 64, %s19
        %p286 = scmp.lt.s32.totalorder %s285, 255
        %s287 = scalar_select %p286, %s285, 255
        %s288 = smul.addr %s287, 4
        %s289 = smul.addr %s288, 4
        %s290 = scalar_lea.vmem %s1, %s289
        %s291 = smul.u32 64, %s19
        %p293 = scmp.eq.s32.totalorder %s19, 0
        // Predicated region
        $region49: #{a_call__.3} parent=47 // pred_check
          %p294 = pneg %p293
        $region50: #{a_call__.3} parent=47 // pred_check_branch
          %296 = sbr.rel (%p294) target = $region52
        $region51: #{a_call__.3} parent=47 // pred_region
          %297 = vst [vmem:[#allocation2] sm:$0xff] 0.0
          %298 = vst [vmem:[#allocation2 + $0x8] sm:$0xff] 0.0
          %299 = vst [vmem:[#allocation2 + $0x10] sm:$0xff] 0.0
          %300 = vst [vmem:[#allocation2 + $0x18] sm:$0xff] 0.0
        $region52: #{a_call__.3} parent=47 // pred_fallthru
          _
        %v301 = vld [vmem:[#allocation2] sm:$0xff]
        %v302 = vld [vmem:[#allocation2 + $0x8] sm:$0xff]
        %v303 = vld [vmem:[#allocation2 + $0x10] sm:$0xff]
        %v304 = vld [vmem:[#allocation2 + $0x18] sm:$0xff]
        %v305 = vld [vmem:[%s283] sm:$0xff]
        %v306 = vld [vmem:[%s283 + $0x8] sm:$0xff]
        %v307 = vld [vmem:[%s290] sm:$0xff]
        %v308 = vld [vmem:[%s290 + $0x8] sm:$0xff]
        %v309 = vld [vmem:[%s290 + $0x10] sm:$0xff]
        %v310 = vld [vmem:[%s290 + $0x18] sm:$0xff]
        %v311 = vld [vmem:[%s290 + $0x20] sm:$0xff]
        %v312 = vld [vmem:[%s290 + $0x28] sm:$0xff]
        %v313 = vld [vmem:[%s290 + $0x30] sm:$0xff]
        %v314 = vld [vmem:[%s290 + $0x38] sm:$0xff]
        %v315 = vld [vmem:[%s290 + $0x40] sm:$0xff]
        %v316 = vld [vmem:[%s290 + $0x48] sm:$0xff]
        %v317 = vld [vmem:[%s290 + $0x50] sm:$0xff]
        %v318 = vld [vmem:[%s290 + $0x58] sm:$0xff]
        %v319 = vld [vmem:[%s290 + $0x60] sm:$0xff]
        %v320 = vld [vmem:[%s290 + $0x68] sm:$0xff]
        %v321 = vld [vmem:[%s290 + $0x70] sm:$0xff]
        %v322 = vld [vmem:[%s290 + $0x78] sm:$0xff]
        %v323 = vld [vmem:[%s290 + $0x80] sm:$0xff]
        %v324 = vld [vmem:[%s290 + $0x88] sm:$0xff]
        %v325 = vld [vmem:[%s290 + $0x90] sm:$0xff]
        %v326 = vld [vmem:[%s290 + $0x98] sm:$0xff]
        %v327 = vld [vmem:[%s290 + $0xa0] sm:$0xff]
        %v328 = vld [vmem:[%s290 + $0xa8] sm:$0xff]
        %v329 = vld [vmem:[%s290 + $0xb0] sm:$0xff]
        %v330 = vld [vmem:[%s290 + $0xb8] sm:$0xff]
        %v331 = vld [vmem:[%s290 + $0xc0] sm:$0xff]
        %v332 = vld [vmem:[%s290 + $0xc8] sm:$0xff]
        %v333 = vld [vmem:[%s290 + $0xd0] sm:$0xff]
        %v334 = vld [vmem:[%s290 + $0xd8] sm:$0xff]
        %v335 = vld [vmem:[%s290 + $0xe0] sm:$0xff]
        %v336 = vld [vmem:[%s290 + $0xe8] sm:$0xff]
        %v337 = vld [vmem:[%s290 + $0xf0] sm:$0xff]
        %v338 = vld [vmem:[%s290 + $0xf8] sm:$0xff]
        %v339 = vld [vmem:[%s290 + $0x100] sm:$0xff]
        %v340 = vld [vmem:[%s290 + $0x108] sm:$0xff]
        %v341 = vld [vmem:[%s290 + $0x110] sm:$0xff]
        %v342 = vld [vmem:[%s290 + $0x118] sm:$0xff]
        %v343 = vld [vmem:[%s290 + $0x120] sm:$0xff]
        %v344 = vld [vmem:[%s290 + $0x128] sm:$0xff]
        %v345 = vld [vmem:[%s290 + $0x130] sm:$0xff]
        %v346 = vld [vmem:[%s290 + $0x138] sm:$0xff]
        %v347 = vld [vmem:[%s290 + $0x140] sm:$0xff]
        %v348 = vld [vmem:[%s290 + $0x148] sm:$0xff]
        %v349 = vld [vmem:[%s290 + $0x150] sm:$0xff]
        %v350 = vld [vmem:[%s290 + $0x158] sm:$0xff]
        %v351 = vld [vmem:[%s290 + $0x160] sm:$0xff]
        %v352 = vld [vmem:[%s290 + $0x168] sm:$0xff]
        %v353 = vld [vmem:[%s290 + $0x170] sm:$0xff]
        %v354 = vld [vmem:[%s290 + $0x178] sm:$0xff]
        %v355 = vld [vmem:[%s290 + $0x180] sm:$0xff]
        %v356 = vld [vmem:[%s290 + $0x188] sm:$0xff]
        %v357 = vld [vmem:[%s290 + $0x190] sm:$0xff]
        %v358 = vld [vmem:[%s290 + $0x198] sm:$0xff]
        %v359 = vld [vmem:[%s290 + $0x1a0] sm:$0xff]
        %v360 = vld [vmem:[%s290 + $0x1a8] sm:$0xff]
        %v361 = vld [vmem:[%s290 + $0x1b0] sm:$0xff]
        %v362 = vld [vmem:[%s290 + $0x1b8] sm:$0xff]
        %v363 = vld [vmem:[%s290 + $0x1c0] sm:$0xff]
        %v364 = vld [vmem:[%s290 + $0x1c8] sm:$0xff]
        %v365 = vld [vmem:[%s290 + $0x1d0] sm:$0xff]
        %v366 = vld [vmem:[%s290 + $0x1d8] sm:$0xff]
        %v367 = vld [vmem:[%s290 + $0x1e0] sm:$0xff]
        %v368 = vld [vmem:[%s290 + $0x1e8] sm:$0xff]
        %v369 = vld [vmem:[%s290 + $0x1f0] sm:$0xff]
        %v370 = vld [vmem:[%s290 + $0x1f8] sm:$0xff]
        %v371 = vld [vmem:[%s290 + $0x200] sm:$0xff]
        %v372 = vld [vmem:[%s290 + $0x208] sm:$0xff]
        %v373 = vld [vmem:[%s290 + $0x210] sm:$0xff]
        %v374 = vld [vmem:[%s290 + $0x218] sm:$0xff]
        %v375 = vld [vmem:[%s290 + $0x220] sm:$0xff]
        %v376 = vld [vmem:[%s290 + $0x228] sm:$0xff]
        %v377 = vld [vmem:[%s290 + $0x230] sm:$0xff]
        %v378 = vld [vmem:[%s290 + $0x238] sm:$0xff]
        %v379 = vld [vmem:[%s290 + $0x240] sm:$0xff]
        %v380 = vld [vmem:[%s290 + $0x248] sm:$0xff]
        %v381 = vld [vmem:[%s290 + $0x250] sm:$0xff]
        %v382 = vld [vmem:[%s290 + $0x258] sm:$0xff]
        %v383 = vld [vmem:[%s290 + $0x260] sm:$0xff]
        %v384 = vld [vmem:[%s290 + $0x268] sm:$0xff]
        %v385 = vld [vmem:[%s290 + $0x270] sm:$0xff]
        %v386 = vld [vmem:[%s290 + $0x278] sm:$0xff]
        %v387 = vld [vmem:[%s290 + $0x280] sm:$0xff]
        %v388 = vld [vmem:[%s290 + $0x288] sm:$0xff]
        %v389 = vld [vmem:[%s290 + $0x290] sm:$0xff]
        %v390 = vld [vmem:[%s290 + $0x298] sm:$0xff]
        %v391 = vld [vmem:[%s290 + $0x2a0] sm:$0xff]
        %v392 = vld [vmem:[%s290 + $0x2a8] sm:$0xff]
        %v393 = vld [vmem:[%s290 + $0x2b0] sm:$0xff]
        %v394 = vld [vmem:[%s290 + $0x2b8] sm:$0xff]
        %v395 = vld [vmem:[%s290 + $0x2c0] sm:$0xff]
        %v396 = vld [vmem:[%s290 + $0x2c8] sm:$0xff]
        %v397 = vld [vmem:[%s290 + $0x2d0] sm:$0xff]
        %v398 = vld [vmem:[%s290 + $0x2d8] sm:$0xff]
        %v399 = vld [vmem:[%s290 + $0x2e0] sm:$0xff]
        %v400 = vld [vmem:[%s290 + $0x2e8] sm:$0xff]
        %v401 = vld [vmem:[%s290 + $0x2f0] sm:$0xff]
        %v402 = vld [vmem:[%s290 + $0x2f8] sm:$0xff]
        %v403 = vld [vmem:[%s290 + $0x300] sm:$0xff]
        %v404 = vld [vmem:[%s290 + $0x308] sm:$0xff]
        %v405 = vld [vmem:[%s290 + $0x310] sm:$0xff]
        %v406 = vld [vmem:[%s290 + $0x318] sm:$0xff]
        %v407 = vld [vmem:[%s290 + $0x320] sm:$0xff]
        %v408 = vld [vmem:[%s290 + $0x328] sm:$0xff]
        %v409 = vld [vmem:[%s290 + $0x330] sm:$0xff]
        %v410 = vld [vmem:[%s290 + $0x338] sm:$0xff]
        %v411 = vld [vmem:[%s290 + $0x340] sm:$0xff]
        %v412 = vld [vmem:[%s290 + $0x348] sm:$0xff]
        %v413 = vld [vmem:[%s290 + $0x350] sm:$0xff]
        %v414 = vld [vmem:[%s290 + $0x358] sm:$0xff]
        %v415 = vld [vmem:[%s290 + $0x360] sm:$0xff]
        %v416 = vld [vmem:[%s290 + $0x368] sm:$0xff]
        %v417 = vld [vmem:[%s290 + $0x370] sm:$0xff]
        %v418 = vld [vmem:[%s290 + $0x378] sm:$0xff]
        %v419 = vld [vmem:[%s290 + $0x380] sm:$0xff]
        %v420 = vld [vmem:[%s290 + $0x388] sm:$0xff]
        %v421 = vld [vmem:[%s290 + $0x390] sm:$0xff]
        %v422 = vld [vmem:[%s290 + $0x398] sm:$0xff]
        %v423 = vld [vmem:[%s290 + $0x3a0] sm:$0xff]
        %v424 = vld [vmem:[%s290 + $0x3a8] sm:$0xff]
        %v425 = vld [vmem:[%s290 + $0x3b0] sm:$0xff]
        %v426 = vld [vmem:[%s290 + $0x3b8] sm:$0xff]
        %v427 = vld [vmem:[%s290 + $0x3c0] sm:$0xff]
        %v428 = vld [vmem:[%s290 + $0x3c8] sm:$0xff]
        %v429 = vld [vmem:[%s290 + $0x3d0] sm:$0xff]
        %v430 = vld [vmem:[%s290 + $0x3d8] sm:$0xff]
        %v431 = vld [vmem:[%s290 + $0x3e0] sm:$0xff]
        %v432 = vld [vmem:[%s290 + $0x3e8] sm:$0xff]
        %v433 = vld [vmem:[%s290 + $0x3f0] sm:$0xff]
        %v434 = vld [vmem:[%s290 + $0x3f8] sm:$0xff]
        %v437 = vunpack.c.l.b16 %v305
        %v438 = vunpack.c.h.b16 %v305
        %v439 = vunpack.c.l.b16 %v306
        %v440 = vunpack.c.h.b16 %v306
        %v441 = vpack.c.b16 %v437, %v437
        %v442 = vpack.c.b16 %v438, %v438
        %v443 = vpack.c.b16 %v439, %v439
        %v444 = vpack.c.b16 %v440, %v440
        %v577 = vunpack.c.l.b16 %v307
        %v578 = vunpack.c.h.b16 %v307
        %v579 = vunpack.c.l.b16 %v308
        %v580 = vunpack.c.h.b16 %v308
        %v581 = vunpack.c.l.b16 %v309
        %v582 = vunpack.c.h.b16 %v309
        %v583 = vunpack.c.l.b16 %v310
        %v584 = vunpack.c.h.b16 %v310
        %v585 = vunpack.c.l.b16 %v311
        %v586 = vunpack.c.h.b16 %v311
        %v587 = vunpack.c.l.b16 %v312
        %v588 = vunpack.c.h.b16 %v312
        %v589 = vunpack.c.l.b16 %v313
        %v590 = vunpack.c.h.b16 %v313
        %v591 = vunpack.c.l.b16 %v314
        %v592 = vunpack.c.h.b16 %v314
        %v593 = vunpack.c.l.b16 %v315
        %v594 = vunpack.c.h.b16 %v315
        %v595 = vunpack.c.l.b16 %v316
        %v596 = vunpack.c.h.b16 %v316
        %v597 = vunpack.c.l.b16 %v317
        %v598 = vunpack.c.h.b16 %v317
        %v599 = vunpack.c.l.b16 %v318
        %v600 = vunpack.c.h.b16 %v318
        %v601 = vunpack.c.l.b16 %v319
        %v602 = vunpack.c.h.b16 %v319
        %v603 = vunpack.c.l.b16 %v320
        %v604 = vunpack.c.h.b16 %v320
        %v605 = vunpack.c.l.b16 %v321
        %v606 = vunpack.c.h.b16 %v321
        %v607 = vunpack.c.l.b16 %v322
        %v608 = vunpack.c.h.b16 %v322
        %v609 = vunpack.c.l.b16 %v323
        %v610 = vunpack.c.h.b16 %v323
        %v611 = vunpack.c.l.b16 %v324
        %v612 = vunpack.c.h.b16 %v324
        %v613 = vunpack.c.l.b16 %v325
        %v614 = vunpack.c.h.b16 %v325
        %v615 = vunpack.c.l.b16 %v326
        %v616 = vunpack.c.h.b16 %v326
        %v617 = vunpack.c.l.b16 %v327
        %v618 = vunpack.c.h.b16 %v327
        %v619 = vunpack.c.l.b16 %v328
        %v620 = vunpack.c.h.b16 %v328
        %v621 = vunpack.c.l.b16 %v329
        %v622 = vunpack.c.h.b16 %v329
        %v623 = vunpack.c.l.b16 %v330
        %v624 = vunpack.c.h.b16 %v330
        %v625 = vunpack.c.l.b16 %v331
        %v626 = vunpack.c.h.b16 %v331
        %v627 = vunpack.c.l.b16 %v332
        %v628 = vunpack.c.h.b16 %v332
        %v629 = vunpack.c.l.b16 %v333
        %v630 = vunpack.c.h.b16 %v333
        %v631 = vunpack.c.l.b16 %v334
        %v632 = vunpack.c.h.b16 %v334
        %v633 = vunpack.c.l.b16 %v335
        %v634 = vunpack.c.h.b16 %v335
        %v635 = vunpack.c.l.b16 %v336
        %v636 = vunpack.c.h.b16 %v336
        %v637 = vunpack.c.l.b16 %v337
        %v638 = vunpack.c.h.b16 %v337
        %v639 = vunpack.c.l.b16 %v338
        %v640 = vunpack.c.h.b16 %v338
        %v641 = vunpack.c.l.b16 %v339
        %v642 = vunpack.c.h.b16 %v339
        %v643 = vunpack.c.l.b16 %v340
        %v644 = vunpack.c.h.b16 %v340
        %v645 = vunpack.c.l.b16 %v341
        %v646 = vunpack.c.h.b16 %v341
        %v647 = vunpack.c.l.b16 %v342
        %v648 = vunpack.c.h.b16 %v342
        %v649 = vunpack.c.l.b16 %v343
        %v650 = vunpack.c.h.b16 %v343
        %v651 = vunpack.c.l.b16 %v344
        %v652 = vunpack.c.h.b16 %v344
        %v653 = vunpack.c.l.b16 %v345
        %v654 = vunpack.c.h.b16 %v345
        %v655 = vunpack.c.l.b16 %v346
        %v656 = vunpack.c.h.b16 %v346
        %v657 = vunpack.c.l.b16 %v347
        %v658 = vunpack.c.h.b16 %v347
        %v659 = vunpack.c.l.b16 %v348
        %v660 = vunpack.c.h.b16 %v348
        %v661 = vunpack.c.l.b16 %v349
        %v662 = vunpack.c.h.b16 %v349
        %v663 = vunpack.c.l.b16 %v350
        %v664 = vunpack.c.h.b16 %v350
        %v665 = vunpack.c.l.b16 %v351
        %v666 = vunpack.c.h.b16 %v351
        %v667 = vunpack.c.l.b16 %v352
        %v668 = vunpack.c.h.b16 %v352
        %v669 = vunpack.c.l.b16 %v353
        %v670 = vunpack.c.h.b16 %v353
        %v671 = vunpack.c.l.b16 %v354
        %v672 = vunpack.c.h.b16 %v354
        %v673 = vunpack.c.l.b16 %v355
        %v674 = vunpack.c.h.b16 %v355
        %v675 = vunpack.c.l.b16 %v356
        %v676 = vunpack.c.h.b16 %v356
        %v677 = vunpack.c.l.b16 %v357
        %v678 = vunpack.c.h.b16 %v357
        %v679 = vunpack.c.l.b16 %v358
        %v680 = vunpack.c.h.b16 %v358
        %v681 = vunpack.c.l.b16 %v359
        %v682 = vunpack.c.h.b16 %v359
        %v683 = vunpack.c.l.b16 %v360
        %v684 = vunpack.c.h.b16 %v360
        %v685 = vunpack.c.l.b16 %v361
        %v686 = vunpack.c.h.b16 %v361
        %v687 = vunpack.c.l.b16 %v362
        %v688 = vunpack.c.h.b16 %v362
        %v689 = vunpack.c.l.b16 %v363
        %v690 = vunpack.c.h.b16 %v363
        %v691 = vunpack.c.l.b16 %v364
        %v692 = vunpack.c.h.b16 %v364
        %v693 = vunpack.c.l.b16 %v365
        %v694 = vunpack.c.h.b16 %v365
        %v695 = vunpack.c.l.b16 %v366
        %v696 = vunpack.c.h.b16 %v366
        %v697 = vunpack.c.l.b16 %v367
        %v698 = vunpack.c.h.b16 %v367
        %v699 = vunpack.c.l.b16 %v368
        %v700 = vunpack.c.h.b16 %v368
        %v701 = vunpack.c.l.b16 %v369
        %v702 = vunpack.c.h.b16 %v369
        %v703 = vunpack.c.l.b16 %v370
        %v704 = vunpack.c.h.b16 %v370
        %v705 = vunpack.c.l.b16 %v371
        %v706 = vunpack.c.h.b16 %v371
        %v707 = vunpack.c.l.b16 %v372
        %v708 = vunpack.c.h.b16 %v372
        %v709 = vunpack.c.l.b16 %v373
        %v710 = vunpack.c.h.b16 %v373
        %v711 = vunpack.c.l.b16 %v374
        %v712 = vunpack.c.h.b16 %v374
        %v713 = vunpack.c.l.b16 %v375
        %v714 = vunpack.c.h.b16 %v375
        %v715 = vunpack.c.l.b16 %v376
        %v716 = vunpack.c.h.b16 %v376
        %v717 = vunpack.c.l.b16 %v377
        %v718 = vunpack.c.h.b16 %v377
        %v719 = vunpack.c.l.b16 %v378
        %v720 = vunpack.c.h.b16 %v378
        %v721 = vunpack.c.l.b16 %v379
        %v722 = vunpack.c.h.b16 %v379
        %v723 = vunpack.c.l.b16 %v380
        %v724 = vunpack.c.h.b16 %v380
        %v725 = vunpack.c.l.b16 %v381
        %v726 = vunpack.c.h.b16 %v381
        %v727 = vunpack.c.l.b16 %v382
        %v728 = vunpack.c.h.b16 %v382
        %v729 = vunpack.c.l.b16 %v383
        %v730 = vunpack.c.h.b16 %v383
        %v731 = vunpack.c.l.b16 %v384
        %v732 = vunpack.c.h.b16 %v384
        %v733 = vunpack.c.l.b16 %v385
        %v734 = vunpack.c.h.b16 %v385
        %v735 = vunpack.c.l.b16 %v386
        %v736 = vunpack.c.h.b16 %v386
        %v737 = vunpack.c.l.b16 %v387
        %v738 = vunpack.c.h.b16 %v387
        %v739 = vunpack.c.l.b16 %v388
        %v740 = vunpack.c.h.b16 %v388
        %v741 = vunpack.c.l.b16 %v389
        %v742 = vunpack.c.h.b16 %v389
        %v743 = vunpack.c.l.b16 %v390
        %v744 = vunpack.c.h.b16 %v390
        %v745 = vunpack.c.l.b16 %v391
        %v746 = vunpack.c.h.b16 %v391
        %v747 = vunpack.c.l.b16 %v392
        %v748 = vunpack.c.h.b16 %v392
        %v749 = vunpack.c.l.b16 %v393
        %v750 = vunpack.c.h.b16 %v393
        %v751 = vunpack.c.l.b16 %v394
        %v752 = vunpack.c.h.b16 %v394
        %v753 = vunpack.c.l.b16 %v395
        %v754 = vunpack.c.h.b16 %v395
        %v755 = vunpack.c.l.b16 %v396
        %v756 = vunpack.c.h.b16 %v396
        %v757 = vunpack.c.l.b16 %v397
        %v758 = vunpack.c.h.b16 %v397
        %v759 = vunpack.c.l.b16 %v398
        %v760 = vunpack.c.h.b16 %v398
        %v761 = vunpack.c.l.b16 %v399
        %v762 = vunpack.c.h.b16 %v399
        %v763 = vunpack.c.l.b16 %v400
        %v764 = vunpack.c.h.b16 %v400
        %v765 = vunpack.c.l.b16 %v401
        %v766 = vunpack.c.h.b16 %v401
        %v767 = vunpack.c.l.b16 %v402
        %v768 = vunpack.c.h.b16 %v402
        %v769 = vunpack.c.l.b16 %v403
        %v770 = vunpack.c.h.b16 %v403
        %v771 = vunpack.c.l.b16 %v404
        %v772 = vunpack.c.h.b16 %v404
        %v773 = vunpack.c.l.b16 %v405
        %v774 = vunpack.c.h.b16 %v405
        %v775 = vunpack.c.l.b16 %v406
        %v776 = vunpack.c.h.b16 %v406
        %v777 = vunpack.c.l.b16 %v407
        %v778 = vunpack.c.h.b16 %v407
        %v779 = vunpack.c.l.b16 %v408
        %v780 = vunpack.c.h.b16 %v408
        %v781 = vunpack.c.l.b16 %v409
        %v782 = vunpack.c.h.b16 %v409
        %v783 = vunpack.c.l.b16 %v410
        %v784 = vunpack.c.h.b16 %v410
        %v785 = vunpack.c.l.b16 %v411
        %v786 = vunpack.c.h.b16 %v411
        %v787 = vunpack.c.l.b16 %v412
        %v788 = vunpack.c.h.b16 %v412
        %v789 = vunpack.c.l.b16 %v413
        %v790 = vunpack.c.h.b16 %v413
        %v791 = vunpack.c.l.b16 %v414
        %v792 = vunpack.c.h.b16 %v414
        %v793 = vunpack.c.l.b16 %v415
        %v794 = vunpack.c.h.b16 %v415
        %v795 = vunpack.c.l.b16 %v416
        %v796 = vunpack.c.h.b16 %v416
        %v797 = vunpack.c.l.b16 %v417
        %v798 = vunpack.c.h.b16 %v417
        %v799 = vunpack.c.l.b16 %v418
        %v800 = vunpack.c.h.b16 %v418
        %v801 = vunpack.c.l.b16 %v419
        %v802 = vunpack.c.h.b16 %v419
        %v803 = vunpack.c.l.b16 %v420
        %v804 = vunpack.c.h.b16 %v420
        %v805 = vunpack.c.l.b16 %v421
        %v806 = vunpack.c.h.b16 %v421
        %v807 = vunpack.c.l.b16 %v422
        %v808 = vunpack.c.h.b16 %v422
        %v809 = vunpack.c.l.b16 %v423
        %v810 = vunpack.c.h.b16 %v423
        %v811 = vunpack.c.l.b16 %v424
        %v812 = vunpack.c.h.b16 %v424
        %v813 = vunpack.c.l.b16 %v425
        %v814 = vunpack.c.h.b16 %v425
        %v815 = vunpack.c.l.b16 %v426
        %v816 = vunpack.c.h.b16 %v426
        %v817 = vunpack.c.l.b16 %v427
        %v818 = vunpack.c.h.b16 %v427
        %v819 = vunpack.c.l.b16 %v428
        %v820 = vunpack.c.h.b16 %v428
        %v821 = vunpack.c.l.b16 %v429
        %v822 = vunpack.c.h.b16 %v429
        %v823 = vunpack.c.l.b16 %v430
        %v824 = vunpack.c.h.b16 %v430
        %v825 = vunpack.c.l.b16 %v431
        %v826 = vunpack.c.h.b16 %v431
        %v827 = vunpack.c.l.b16 %v432
        %v828 = vunpack.c.h.b16 %v432
        %v829 = vunpack.c.l.b16 %v433
        %v830 = vunpack.c.h.b16 %v433
        %v831 = vunpack.c.l.b16 %v434
        %v832 = vunpack.c.h.b16 %v434
        %v833 = vpack.c.b16 %v581, %v577
        %v834 = vpack.c.b16 %v582, %v578
        %v835 = vpack.c.b16 %v583, %v579
        %v836 = vpack.c.b16 %v584, %v580
        %v837 = vpack.c.b16 %v589, %v585
        %v838 = vpack.c.b16 %v590, %v586
        %v839 = vpack.c.b16 %v591, %v587
        %v840 = vpack.c.b16 %v592, %v588
        %v841 = vpack.c.b16 %v597, %v593
        %v842 = vpack.c.b16 %v598, %v594
        %v843 = vpack.c.b16 %v599, %v595
        %v844 = vpack.c.b16 %v600, %v596
        %v845 = vpack.c.b16 %v605, %v601
        %v846 = vpack.c.b16 %v606, %v602
        %v847 = vpack.c.b16 %v607, %v603
        %v848 = vpack.c.b16 %v608, %v604
        %v849 = vpack.c.b16 %v613, %v609
        %v850 = vpack.c.b16 %v614, %v610
        %v851 = vpack.c.b16 %v615, %v611
        %v852 = vpack.c.b16 %v616, %v612
        %v853 = vpack.c.b16 %v621, %v617
        %v854 = vpack.c.b16 %v622, %v618
        %v855 = vpack.c.b16 %v623, %v619
        %v856 = vpack.c.b16 %v624, %v620
        %v857 = vpack.c.b16 %v629, %v625
        %v858 = vpack.c.b16 %v630, %v626
        %v859 = vpack.c.b16 %v631, %v627
        %v860 = vpack.c.b16 %v632, %v628
        %v861 = vpack.c.b16 %v637, %v633
        %v862 = vpack.c.b16 %v638, %v634
        %v863 = vpack.c.b16 %v639, %v635
        %v864 = vpack.c.b16 %v640, %v636
        %v865 = vpack.c.b16 %v645, %v641
        %v866 = vpack.c.b16 %v646, %v642
        %v867 = vpack.c.b16 %v647, %v643
        %v868 = vpack.c.b16 %v648, %v644
        %v869 = vpack.c.b16 %v653, %v649
        %v870 = vpack.c.b16 %v654, %v650
        %v871 = vpack.c.b16 %v655, %v651
        %v872 = vpack.c.b16 %v656, %v652
        %v873 = vpack.c.b16 %v661, %v657
        %v874 = vpack.c.b16 %v662, %v658
        %v875 = vpack.c.b16 %v663, %v659
        %v876 = vpack.c.b16 %v664, %v660
        %v877 = vpack.c.b16 %v669, %v665
        %v878 = vpack.c.b16 %v670, %v666
        %v879 = vpack.c.b16 %v671, %v667
        %v880 = vpack.c.b16 %v672, %v668
        %v881 = vpack.c.b16 %v677, %v673
        %v882 = vpack.c.b16 %v678, %v674
        %v883 = vpack.c.b16 %v679, %v675
        %v884 = vpack.c.b16 %v680, %v676
        %v885 = vpack.c.b16 %v685, %v681
        %v886 = vpack.c.b16 %v686, %v682
        %v887 = vpack.c.b16 %v687, %v683
        %v888 = vpack.c.b16 %v688, %v684
        %v889 = vpack.c.b16 %v693, %v689
        %v890 = vpack.c.b16 %v694, %v690
        %v891 = vpack.c.b16 %v695, %v691
        %v892 = vpack.c.b16 %v696, %v692
        %v893 = vpack.c.b16 %v701, %v697
        %v894 = vpack.c.b16 %v702, %v698
        %v895 = vpack.c.b16 %v703, %v699
        %v896 = vpack.c.b16 %v704, %v700
        %v897 = vpack.c.b16 %v709, %v705
        %v898 = vpack.c.b16 %v710, %v706
        %v899 = vpack.c.b16 %v711, %v707
        %v900 = vpack.c.b16 %v712, %v708
        %v901 = vpack.c.b16 %v717, %v713
        %v902 = vpack.c.b16 %v718, %v714
        %v903 = vpack.c.b16 %v719, %v715
        %v904 = vpack.c.b16 %v720, %v716
        %v905 = vpack.c.b16 %v725, %v721
        %v906 = vpack.c.b16 %v726, %v722
        %v907 = vpack.c.b16 %v727, %v723
        %v908 = vpack.c.b16 %v728, %v724
        %v909 = vpack.c.b16 %v733, %v729
        %v910 = vpack.c.b16 %v734, %v730
        %v911 = vpack.c.b16 %v735, %v731
        %v912 = vpack.c.b16 %v736, %v732
        %v913 = vpack.c.b16 %v741, %v737
        %v914 = vpack.c.b16 %v742, %v738
        %v915 = vpack.c.b16 %v743, %v739
        %v916 = vpack.c.b16 %v744, %v740
        %v917 = vpack.c.b16 %v749, %v745
        %v918 = vpack.c.b16 %v750, %v746
        %v919 = vpack.c.b16 %v751, %v747
        %v920 = vpack.c.b16 %v752, %v748
        %v921 = vpack.c.b16 %v757, %v753
        %v922 = vpack.c.b16 %v758, %v754
        %v923 = vpack.c.b16 %v759, %v755
        %v924 = vpack.c.b16 %v760, %v756
        %v925 = vpack.c.b16 %v765, %v761
        %v926 = vpack.c.b16 %v766, %v762
        %v927 = vpack.c.b16 %v767, %v763
        %v928 = vpack.c.b16 %v768, %v764
        %v929 = vpack.c.b16 %v773, %v769
        %v930 = vpack.c.b16 %v774, %v770
        %v931 = vpack.c.b16 %v775, %v771
        %v932 = vpack.c.b16 %v776, %v772
        %v933 = vpack.c.b16 %v781, %v777
        %v934 = vpack.c.b16 %v782, %v778
        %v935 = vpack.c.b16 %v783, %v779
        %v936 = vpack.c.b16 %v784, %v780
        %v937 = vpack.c.b16 %v789, %v785
        %v938 = vpack.c.b16 %v790, %v786
        %v939 = vpack.c.b16 %v791, %v787
        %v940 = vpack.c.b16 %v792, %v788
        %v941 = vpack.c.b16 %v797, %v793
        %v942 = vpack.c.b16 %v798, %v794
        %v943 = vpack.c.b16 %v799, %v795
        %v944 = vpack.c.b16 %v800, %v796
        %v945 = vpack.c.b16 %v805, %v801
        %v946 = vpack.c.b16 %v806, %v802
        %v947 = vpack.c.b16 %v807, %v803
        %v948 = vpack.c.b16 %v808, %v804
        %v949 = vpack.c.b16 %v813, %v809
        %v950 = vpack.c.b16 %v814, %v810
        %v951 = vpack.c.b16 %v815, %v811
        %v952 = vpack.c.b16 %v816, %v812
        %v953 = vpack.c.b16 %v821, %v817
        %v954 = vpack.c.b16 %v822, %v818
        %v955 = vpack.c.b16 %v823, %v819
        %v956 = vpack.c.b16 %v824, %v820
        %v957 = vpack.c.b16 %v829, %v825
        %v958 = vpack.c.b16 %v830, %v826
        %v959 = vpack.c.b16 %v831, %v827
        %v960 = vpack.c.b16 %v832, %v828
        %1089 = vmatprep.subr.bf16.mxu0 %v834
        %1090 = vmatpush1.bf16.msra.mxu0 %v833
        %1091 = vmatprep.subr.bf16.mxu0 %v838
        %1092 = vmatpush1.bf16.msra.mxu0 %v837
        %1093 = vmatprep.subr.bf16.mxu0 %v842
        %1094 = vmatpush1.bf16.msra.mxu0 %v841
        %1095 = vmatprep.subr.bf16.mxu0 %v846
        %1096 = vmatpush1.bf16.msra.mxu0 %v845
        %1097 = vmatprep.subr.bf16.mxu0 %v850
        %1098 = vmatpush1.bf16.msra.mxu0 %v849
        %1099 = vmatprep.subr.bf16.mxu0 %v854
        %1100 = vmatpush1.bf16.msra.mxu0 %v853
        %1101 = vmatprep.subr.bf16.mxu0 %v858
        %1102 = vmatpush1.bf16.msra.mxu0 %v857
        %1103 = vmatprep.subr.bf16.mxu0 %v862
        %1104 = vmatpush1.bf16.msra.mxu0 %v861
        %1105 = vmatprep.subr.bf16.mxu0 %v866
        %1106 = vmatpush1.bf16.msra.mxu0 %v865
        %1107 = vmatprep.subr.bf16.mxu0 %v870
        %1108 = vmatpush1.bf16.msra.mxu0 %v869
        %1109 = vmatprep.subr.bf16.mxu0 %v874
        %1110 = vmatpush1.bf16.msra.mxu0 %v873
        %1111 = vmatprep.subr.bf16.mxu0 %v878
        %1112 = vmatpush1.bf16.msra.mxu0 %v877
        %1113 = vmatprep.subr.bf16.mxu0 %v882
        %1114 = vmatpush1.bf16.msra.mxu0 %v881
        %1115 = vmatprep.subr.bf16.mxu0 %v886
        %1116 = vmatpush1.bf16.msra.mxu0 %v885
        %1117 = vmatprep.subr.bf16.mxu0 %v890
        %1118 = vmatpush1.bf16.msra.mxu0 %v889
        %1119 = vmatprep.subr.bf16.mxu0 %v894
        %1120 = vmatpush1.bf16.msra.mxu0 %v893
        %1121 = vmatprep.mubr.bf16.mxu0 %v442
        %1122 = vmatmul.mubr.bf16.gmra.mrb[0].mxu0 %v441
        %v1123 = vpop.f32.mrb[0].mxu0
        %v1124 = vadd.f32 0.0, %v1123
        %v1125 = vpop.f32.mrb[0].mxu0
        %v1126 = vadd.f32 0.0, %v1125
        %v1127 = vpop.f32.mrb[0].mxu0
        %v1128 = vpop.f32.mrb[0].mxu0
        %1129 = vdwg.mxu0
        %1130 = vmatprep.subr.bf16.mxu0 %v898
        %1131 = vmatpush1.bf16.msra.mxu0 %v897
        %1132 = vmatprep.subr.bf16.mxu0 %v902
        %1133 = vmatpush1.bf16.msra.mxu0 %v901
        %1134 = vmatprep.subr.bf16.mxu0 %v906
        %1135 = vmatpush1.bf16.msra.mxu0 %v905
        %1136 = vmatprep.subr.bf16.mxu0 %v910
        %1137 = vmatpush1.bf16.msra.mxu0 %v909
        %1138 = vmatprep.subr.bf16.mxu0 %v914
        %1139 = vmatpush1.bf16.msra.mxu0 %v913
        %1140 = vmatprep.subr.bf16.mxu0 %v918
        %1141 = vmatpush1.bf16.msra.mxu0 %v917
        %1142 = vmatprep.subr.bf16.mxu0 %v922
        %1143 = vmatpush1.bf16.msra.mxu0 %v921
        %1144 = vmatprep.subr.bf16.mxu0 %v926
        %1145 = vmatpush1.bf16.msra.mxu0 %v925
        %1146 = vmatprep.subr.bf16.mxu0 %v930
        %1147 = vmatpush1.bf16.msra.mxu0 %v929
        %1148 = vmatprep.subr.bf16.mxu0 %v934
        %1149 = vmatpush1.bf16.msra.mxu0 %v933
        %1150 = vmatprep.subr.bf16.mxu0 %v938
        %1151 = vmatpush1.bf16.msra.mxu0 %v937
        %1152 = vmatprep.subr.bf16.mxu0 %v942
        %1153 = vmatpush1.bf16.msra.mxu0 %v941
        %1154 = vmatprep.subr.bf16.mxu0 %v946
        %1155 = vmatpush1.bf16.msra.mxu0 %v945
        %1156 = vmatprep.subr.bf16.mxu0 %v950
        %1157 = vmatpush1.bf16.msra.mxu0 %v949
        %1158 = vmatprep.subr.bf16.mxu0 %v954
        %1159 = vmatpush1.bf16.msra.mxu0 %v953
        %1160 = vmatprep.subr.bf16.mxu0 %v958
        %1161 = vmatpush1.bf16.msra.mxu0 %v957
        %1162 = vmatprep.mubr.bf16.mxu0 %v444
        %1163 = vmatmul.mubr.bf16.gmra.mrb[0].mxu0 %v443
        %v1164 = vpop.f32.mrb[0].mxu0
        %v1165 = vadd.f32 %v1124, %v1164
        %v1166 = vpop.f32.mrb[0].mxu0
        %v1167 = vadd.f32 %v1126, %v1166
        %v1168 = vpop.f32.mrb[0].mxu0
        %v1169 = vpop.f32.mrb[0].mxu0
        %1170 = vdwg.mxu0
        %1171 = vmatprep.subr.bf16.mxu0 %v836
        %1172 = vmatpush1.bf16.msra.mxu0 %v835
        %1173 = vmatprep.subr.bf16.mxu0 %v840
        %1174 = vmatpush1.bf16.msra.mxu0 %v839
        %1175 = vmatprep.subr.bf16.mxu0 %v844
        %1176 = vmatpush1.bf16.msra.mxu0 %v843
        %1177 = vmatprep.subr.bf16.mxu0 %v848
        %1178 = vmatpush1.bf16.msra.mxu0 %v847
        %1179 = vmatprep.subr.bf16.mxu0 %v852
        %1180 = vmatpush1.bf16.msra.mxu0 %v851
        %1181 = vmatprep.subr.bf16.mxu0 %v856
        %1182 = vmatpush1.bf16.msra.mxu0 %v855
        %1183 = vmatprep.subr.bf16.mxu0 %v860
        %1184 = vmatpush1.bf16.msra.mxu0 %v859
        %1185 = vmatprep.subr.bf16.mxu0 %v864
        %1186 = vmatpush1.bf16.msra.mxu0 %v863
        %1187 = vmatprep.subr.bf16.mxu0 %v868
        %1188 = vmatpush1.bf16.msra.mxu0 %v867
        %1189 = vmatprep.subr.bf16.mxu0 %v872
        %1190 = vmatpush1.bf16.msra.mxu0 %v871
        %1191 = vmatprep.subr.bf16.mxu0 %v876
        %1192 = vmatpush1.bf16.msra.mxu0 %v875
        %1193 = vmatprep.subr.bf16.mxu0 %v880
        %1194 = vmatpush1.bf16.msra.mxu0 %v879
        %1195 = vmatprep.subr.bf16.mxu0 %v884
        %1196 = vmatpush1.bf16.msra.mxu0 %v883
        %1197 = vmatprep.subr.bf16.mxu0 %v888
        %1198 = vmatpush1.bf16.msra.mxu0 %v887
        %1199 = vmatprep.subr.bf16.mxu0 %v892
        %1200 = vmatpush1.bf16.msra.mxu0 %v891
        %1201 = vmatprep.subr.bf16.mxu0 %v896
        %1202 = vmatpush1.bf16.msra.mxu0 %v895
        %1203 = vmatprep.mubr.bf16.mxu0 %v442
        %1204 = vmatmul.mubr.bf16.gmra.mrb[0].mxu0 %v441
        %v1205 = vpop.f32.mrb[0].mxu0
        %v1206 = vadd.f32 0.0, %v1205
        %v1207 = vpop.f32.mrb[0].mxu0
        %v1208 = vadd.f32 0.0, %v1207
        %v1209 = vpop.f32.mrb[0].mxu0
        %v1210 = vpop.f32.mrb[0].mxu0
        %1211 = vdwg.mxu0
        %1212 = vmatprep.subr.bf16.mxu0 %v900
        %1213 = vmatpush1.bf16.msra.mxu0 %v899
        %1214 = vmatprep.subr.bf16.mxu0 %v904
        %1215 = vmatpush1.bf16.msra.mxu0 %v903
        %1216 = vmatprep.subr.bf16.mxu0 %v908
        %1217 = vmatpush1.bf16.msra.mxu0 %v907
        %1218 = vmatprep.subr.bf16.mxu0 %v912
        %1219 = vmatpush1.bf16.msra.mxu0 %v911
        %1220 = vmatprep.subr.bf16.mxu0 %v916
        %1221 = vmatpush1.bf16.msra.mxu0 %v915
        %1222 = vmatprep.subr.bf16.mxu0 %v920
        %1223 = vmatpush1.bf16.msra.mxu0 %v919
        %1224 = vmatprep.subr.bf16.mxu0 %v924
        %1225 = vmatpush1.bf16.msra.mxu0 %v923
        %1226 = vmatprep.subr.bf16.mxu0 %v928
        %1227 = vmatpush1.bf16.msra.mxu0 %v927
        %1228 = vmatprep.subr.bf16.mxu0 %v932
        %1229 = vmatpush1.bf16.msra.mxu0 %v931
        %1230 = vmatprep.subr.bf16.mxu0 %v936
        %1231 = vmatpush1.bf16.msra.mxu0 %v935
        %1232 = vmatprep.subr.bf16.mxu0 %v940
        %1233 = vmatpush1.bf16.msra.mxu0 %v939
        %1234 = vmatprep.subr.bf16.mxu0 %v944
        %1235 = vmatpush1.bf16.msra.mxu0 %v943
        %1236 = vmatprep.subr.bf16.mxu0 %v948
        %1237 = vmatpush1.bf16.msra.mxu0 %v947
        %1238 = vmatprep.subr.bf16.mxu0 %v952
        %1239 = vmatpush1.bf16.msra.mxu0 %v951
        %1240 = vmatprep.subr.bf16.mxu0 %v956
        %1241 = vmatpush1.bf16.msra.mxu0 %v955
        %1242 = vmatprep.subr.bf16.mxu0 %v960
        %1243 = vmatpush1.bf16.msra.mxu0 %v959
        %1244 = vmatprep.mubr.bf16.mxu0 %v444
        %1245 = vmatmul.mubr.bf16.gmra.mrb[0].mxu0 %v443
        %v1246 = vpop.f32.mrb[0].mxu0
        %v1247 = vadd.f32 %v1206, %v1246
        %v1248 = vpop.f32.mrb[0].mxu0
        %v1249 = vadd.f32 %v1208, %v1248
        %v1250 = vpop.f32.mrb[0].mxu0
        %v1251 = vpop.f32.mrb[0].mxu0
        %1252 = vdwg.mxu0
        %v1253 = vadd.f32 %v301, %v1165
        %v1254 = vadd.f32 %v302, %v1167
        %v1255 = vadd.f32 %v303, %v1247
        %v1256 = vadd.f32 %v304, %v1249
        %1257 = vst [vmem:[#allocation2] sm:$0xff] %v1253
        %1258 = vst [vmem:[#allocation2 + $0x8] sm:$0xff] %v1254
        %1259 = vst [vmem:[#allocation2 + $0x10] sm:$0xff] %v1255
        %1260 = vst [vmem:[#allocation2 + $0x18] sm:$0xff] %v1256
        %p1261 = scmp.eq.s32.totalorder %s19, 3
        // Predicated region
        $region53: #{a_call__.3} parent=47 // pred_check
          %p1262 = pneg %p1261
        $region54: #{a_call__.3} parent=47 // pred_check_branch
          %1264 = sbr.rel (%p1262) target = $region56
        $region55: #{a_call__.3} parent=47 // pred_region
          %v1265 = vld [vmem:[#allocation2] sm:$0xff]
          %v1266 = vld [vmem:[#allocation2 + $0x8] sm:$0xff]
          %v1267 = vld [vmem:[#allocation2 + $0x10] sm:$0xff]
          %v1268 = vld [vmem:[#allocation2 + $0x18] sm:$0xff]
          %v1269 = vld [vmem:[%s2] sm:$0xf]
          %v1271 = vlaneseq
          %v1272 = vshrl.u32 %v1271, 7
          %v1273 = vsub.s32 0, %v1272
          %v1274 = vrot.slane %v1269, %v1273
          %v1275 = vlaneseq
          %v1276 = vshrl.u32 %v1275, 7
          %v1277 = vsub.s32 1, %v1276
          %v1278 = vrot.slane %v1269, %v1277
          %v1279 = vlaneseq
          %v1280 = vshrl.u32 %v1279, 7
          %v1281 = vsub.s32 2, %v1280
          %v1282 = vrot.slane %v1269, %v1281
          %v1283 = vlaneseq
          %v1284 = vshrl.u32 %v1283, 7
          %v1285 = vsub.s32 3, %v1284
          %v1286 = vrot.slane %v1269, %v1285
          %v1291 = vadd.f32 %v1265, %v1274
          %v1292 = vadd.f32 %v1266, %v1278
          %v1293 = vadd.f32 %v1267, %v1282
          %v1294 = vadd.f32 %v1268, %v1286
          %v1295 = vmax.f32 %v1291, 0.0
          %v1296 = vmax.f32 %v1292, 0.0
          %v1297 = vmax.f32 %v1293, 0.0
          %v1298 = vmax.f32 %v1294, 0.0
          %v1299 = vpack.c.bf16 %v1295, %v1295
          %v1300 = vpack.c.bf16 %v1296, %v1296
          %v1301 = vpack.c.bf16 %v1297, %v1297
          %v1302 = vpack.c.bf16 %v1298, %v1298
          %v1303 = vld [vmem:[%s3] sm:$0xff]
          %v1304 = vld [vmem:[%s3 + $0x8] sm:$0xff]
          %v1305 = vld [vmem:[%s3 + $0x10] sm:$0xff]
          %v1306 = vld [vmem:[%s3 + $0x18] sm:$0xff]
          %v1307 = vld [vmem:[%s3 + $0x20] sm:$0xff]
          %v1308 = vld [vmem:[%s3 + $0x28] sm:$0xff]
          %v1309 = vld [vmem:[%s3 + $0x30] sm:$0xff]
          %v1310 = vld [vmem:[%s3 + $0x38] sm:$0xff]
          %v1311 = vld [vmem:[%s3 + $0x40] sm:$0xff]
          %v1312 = vld [vmem:[%s3 + $0x48] sm:$0xff]
          %v1313 = vld [vmem:[%s3 + $0x50] sm:$0xff]
          %v1314 = vld [vmem:[%s3 + $0x58] sm:$0xff]
          %v1315 = vld [vmem:[%s3 + $0x60] sm:$0xff]
          %v1316 = vld [vmem:[%s3 + $0x68] sm:$0xff]
          %v1317 = vld [vmem:[%s3 + $0x70] sm:$0xff]
          %v1318 = vld [vmem:[%s3 + $0x78] sm:$0xff]
          %v1319 = vld [vmem:[%s3 + $0x80] sm:$0xff]
          %v1320 = vld [vmem:[%s3 + $0x88] sm:$0xff]
          %v1321 = vld [vmem:[%s3 + $0x90] sm:$0xff]
          %v1322 = vld [vmem:[%s3 + $0x98] sm:$0xff]
          %v1323 = vld [vmem:[%s3 + $0xa0] sm:$0xff]
          %v1324 = vld [vmem:[%s3 + $0xa8] sm:$0xff]
          %v1325 = vld [vmem:[%s3 + $0xb0] sm:$0xff]
          %v1326 = vld [vmem:[%s3 + $0xb8] sm:$0xff]
          %v1327 = vld [vmem:[%s3 + $0xc0] sm:$0xff]
          %v1328 = vld [vmem:[%s3 + $0xc8] sm:$0xff]
          %v1329 = vld [vmem:[%s3 + $0xd0] sm:$0xff]
          %v1330 = vld [vmem:[%s3 + $0xd8] sm:$0xff]
          %v1331 = vld [vmem:[%s3 + $0xe0] sm:$0xff]
          %v1332 = vld [vmem:[%s3 + $0xe8] sm:$0xff]
          %v1333 = vld [vmem:[%s3 + $0xf0] sm:$0xff]
          %v1334 = vld [vmem:[%s3 + $0xf8] sm:$0xff]
          %v1335 = vld [vmem:[%s3 + $0x100] sm:$0xff]
          %v1336 = vld [vmem:[%s3 + $0x108] sm:$0xff]
          %v1337 = vld [vmem:[%s3 + $0x110] sm:$0xff]
          %v1338 = vld [vmem:[%s3 + $0x118] sm:$0xff]
          %v1339 = vld [vmem:[%s3 + $0x120] sm:$0xff]
          %v1340 = vld [vmem:[%s3 + $0x128] sm:$0xff]
          %v1341 = vld [vmem:[%s3 + $0x130] sm:$0xff]
          %v1342 = vld [vmem:[%s3 + $0x138] sm:$0xff]
          %v1343 = vld [vmem:[%s3 + $0x140] sm:$0xff]
          %v1344 = vld [vmem:[%s3 + $0x148] sm:$0xff]
          %v1345 = vld [vmem:[%s3 + $0x150] sm:$0xff]
          %v1346 = vld [vmem:[%s3 + $0x158] sm:$0xff]
          %v1347 = vld [vmem:[%s3 + $0x160] sm:$0xff]
          %v1348 = vld [vmem:[%s3 + $0x168] sm:$0xff]
          %v1349 = vld [vmem:[%s3 + $0x170] sm:$0xff]
          %v1350 = vld [vmem:[%s3 + $0x178] sm:$0xff]
          %v1351 = vld [vmem:[%s3 + $0x180] sm:$0xff]
          %v1352 = vld [vmem:[%s3 + $0x188] sm:$0xff]
          %v1353 = vld [vmem:[%s3 + $0x190] sm:$0xff]
          %v1354 = vld [vmem:[%s3 + $0x198] sm:$0xff]
          %v1355 = vld [vmem:[%s3 + $0x1a0] sm:$0xff]
          %v1356 = vld [vmem:[%s3 + $0x1a8] sm:$0xff]
          %v1357 = vld [vmem:[%s3 + $0x1b0] sm:$0xff]
          %v1358 = vld [vmem:[%s3 + $0x1b8] sm:$0xff]
          %v1359 = vld [vmem:[%s3 + $0x1c0] sm:$0xff]
          %v1360 = vld [vmem:[%s3 + $0x1c8] sm:$0xff]
          %v1361 = vld [vmem:[%s3 + $0x1d0] sm:$0xff]
          %v1362 = vld [vmem:[%s3 + $0x1d8] sm:$0xff]
          %v1363 = vld [vmem:[%s3 + $0x1e0] sm:$0xff]
          %v1364 = vld [vmem:[%s3 + $0x1e8] sm:$0xff]
          %v1365 = vld [vmem:[%s3 + $0x1f0] sm:$0xff]
          %v1366 = vld [vmem:[%s3 + $0x1f8] sm:$0xff]
          %v1367 = vld [vmem:[%s4] sm:$0x3]
          %v1369 = vlaneseq
          %v1370 = vshrl.u32 %v1369, 7
          %v1371 = vsub.s32 0, %v1370
          %v1372 = vrot.slane %v1367, %v1371
          %v1373 = vlaneseq
          %v1374 = vshrl.u32 %v1373, 7
          %v1375 = vsub.s32 1, %v1374
          %v1376 = vrot.slane %v1367, %v1375
          %v1443 = vunpack.c.l.b16 %v1303
          %v1444 = vunpack.c.h.b16 %v1303
          %v1445 = vunpack.c.l.b16 %v1304
          %v1446 = vunpack.c.h.b16 %v1304
          %v1447 = vunpack.c.l.b16 %v1305
          %v1448 = vunpack.c.h.b16 %v1305
          %v1449 = vunpack.c.l.b16 %v1306
          %v1450 = vunpack.c.h.b16 %v1306
          %v1451 = vunpack.c.l.b16 %v1307
          %v1452 = vunpack.c.h.b16 %v1307
          %v1453 = vunpack.c.l.b16 %v1308
          %v1454 = vunpack.c.h.b16 %v1308
          %v1455 = vunpack.c.l.b16 %v1309
          %v1456 = vunpack.c.h.b16 %v1309
          %v1457 = vunpack.c.l.b16 %v1310
          %v1458 = vunpack.c.h.b16 %v1310
          %v1459 = vunpack.c.l.b16 %v1311
          %v1460 = vunpack.c.h.b16 %v1311
          %v1461 = vunpack.c.l.b16 %v1312
          %v1462 = vunpack.c.h.b16 %v1312
          %v1463 = vunpack.c.l.b16 %v1313
          %v1464 = vunpack.c.h.b16 %v1313
          %v1465 = vunpack.c.l.b16 %v1314
          %v1466 = vunpack.c.h.b16 %v1314
          %v1467 = vunpack.c.l.b16 %v1315
          %v1468 = vunpack.c.h.b16 %v1315
          %v1469 = vunpack.c.l.b16 %v1316
          %v1470 = vunpack.c.h.b16 %v1316
          %v1471 = vunpack.c.l.b16 %v1317
          %v1472 = vunpack.c.h.b16 %v1317
          %v1473 = vunpack.c.l.b16 %v1318
          %v1474 = vunpack.c.h.b16 %v1318
          %v1475 = vunpack.c.l.b16 %v1319
          %v1476 = vunpack.c.h.b16 %v1319
          %v1477 = vunpack.c.l.b16 %v1320
          %v1478 = vunpack.c.h.b16 %v1320
          %v1479 = vunpack.c.l.b16 %v1321
          %v1480 = vunpack.c.h.b16 %v1321
          %v1481 = vunpack.c.l.b16 %v1322
          %v1482 = vunpack.c.h.b16 %v1322
          %v1483 = vunpack.c.l.b16 %v1323
          %v1484 = vunpack.c.h.b16 %v1323
          %v1485 = vunpack.c.l.b16 %v1324
          %v1486 = vunpack.c.h.b16 %v1324
          %v1487 = vunpack.c.l.b16 %v1325
          %v1488 = vunpack.c.h.b16 %v1325
          %v1489 = vunpack.c.l.b16 %v1326
          %v1490 = vunpack.c.h.b16 %v1326
          %v1491 = vunpack.c.l.b16 %v1327
          %v1492 = vunpack.c.h.b16 %v1327
          %v1493 = vunpack.c.l.b16 %v1328
          %v1494 = vunpack.c.h.b16 %v1328
          %v1495 = vunpack.c.l.b16 %v1329
          %v1496 = vunpack.c.h.b16 %v1329
          %v1497 = vunpack.c.l.b16 %v1330
          %v1498 = vunpack.c.h.b16 %v1330
          %v1499 = vunpack.c.l.b16 %v1331
          %v1500 = vunpack.c.h.b16 %v1331
          %v1501 = vunpack.c.l.b16 %v1332
          %v1502 = vunpack.c.h.b16 %v1332
          %v1503 = vunpack.c.l.b16 %v1333
          %v1504 = vunpack.c.h.b16 %v1333
          %v1505 = vunpack.c.l.b16 %v1334
          %v1506 = vunpack.c.h.b16 %v1334
          %v1507 = vunpack.c.l.b16 %v1335
          %v1508 = vunpack.c.h.b16 %v1335
          %v1509 = vunpack.c.l.b16 %v1336
          %v1510 = vunpack.c.h.b16 %v1336
          %v1511 = vunpack.c.l.b16 %v1337
          %v1512 = vunpack.c.h.b16 %v1337
          %v1513 = vunpack.c.l.b16 %v1338
          %v1514 = vunpack.c.h.b16 %v1338
          %v1515 = vunpack.c.l.b16 %v1339
          %v1516 = vunpack.c.h.b16 %v1339
          %v1517 = vunpack.c.l.b16 %v1340
          %v1518 = vunpack.c.h.b16 %v1340
          %v1519 = vunpack.c.l.b16 %v1341
          %v1520 = vunpack.c.h.b16 %v1341
          %v1521 = vunpack.c.l.b16 %v1342
          %v1522 = vunpack.c.h.b16 %v1342
          %v1523 = vunpack.c.l.b16 %v1343
          %v1524 = vunpack.c.h.b16 %v1343
          %v1525 = vunpack.c.l.b16 %v1344
          %v1526 = vunpack.c.h.b16 %v1344
          %v1527 = vunpack.c.l.b16 %v1345
          %v1528 = vunpack.c.h.b16 %v1345
          %v1529 = vunpack.c.l.b16 %v1346
          %v1530 = vunpack.c.h.b16 %v1346
          %v1531 = vunpack.c.l.b16 %v1347
          %v1532 = vunpack.c.h.b16 %v1347
          %v1533 = vunpack.c.l.b16 %v1348
          %v1534 = vunpack.c.h.b16 %v1348
          %v1535 = vunpack.c.l.b16 %v1349
          %v1536 = vunpack.c.h.b16 %v1349
          %v1537 = vunpack.c.l.b16 %v1350
          %v1538 = vunpack.c.h.b16 %v1350
          %v1539 = vunpack.c.l.b16 %v1351
          %v1540 = vunpack.c.h.b16 %v1351
          %v1541 = vunpack.c.l.b16 %v1352
          %v1542 = vunpack.c.h.b16 %v1352
          %v1543 = vunpack.c.l.b16 %v1353
          %v1544 = vunpack.c.h.b16 %v1353
          %v1545 = vunpack.c.l.b16 %v1354
          %v1546 = vunpack.c.h.b16 %v1354
          %v1547 = vunpack.c.l.b16 %v1355
          %v1548 = vunpack.c.h.b16 %v1355
          %v1549 = vunpack.c.l.b16 %v1356
          %v1550 = vunpack.c.h.b16 %v1356
          %v1551 = vunpack.c.l.b16 %v1357
          %v1552 = vunpack.c.h.b16 %v1357
          %v1553 = vunpack.c.l.b16 %v1358
          %v1554 = vunpack.c.h.b16 %v1358
          %v1555 = vunpack.c.l.b16 %v1359
          %v1556 = vunpack.c.h.b16 %v1359
          %v1557 = vunpack.c.l.b16 %v1360
          %v1558 = vunpack.c.h.b16 %v1360
          %v1559 = vunpack.c.l.b16 %v1361
          %v1560 = vunpack.c.h.b16 %v1361
          %v1561 = vunpack.c.l.b16 %v1362
          %v1562 = vunpack.c.h.b16 %v1362
          %v1563 = vunpack.c.l.b16 %v1363
          %v1564 = vunpack.c.h.b16 %v1363
          %v1565 = vunpack.c.l.b16 %v1364
          %v1566 = vunpack.c.h.b16 %v1364
          %v1567 = vunpack.c.l.b16 %v1365
          %v1568 = vunpack.c.h.b16 %v1365
          %v1569 = vunpack.c.l.b16 %v1366
          %v1570 = vunpack.c.h.b16 %v1366
          %v1571 = vpack.c.b16 %v1445, %v1443
          %v1572 = vpack.c.b16 %v1446, %v1444
          %v1573 = vpack.c.b16 %v1449, %v1447
          %v1574 = vpack.c.b16 %v1450, %v1448
          %v1575 = vpack.c.b16 %v1453, %v1451
          %v1576 = vpack.c.b16 %v1454, %v1452
          %v1577 = vpack.c.b16 %v1457, %v1455
          %v1578 = vpack.c.b16 %v1458, %v1456
          %v1579 = vpack.c.b16 %v1461, %v1459
          %v1580 = vpack.c.b16 %v1462, %v1460
          %v1581 = vpack.c.b16 %v1465, %v1463
          %v1582 = vpack.c.b16 %v1466, %v1464
          %v1583 = vpack.c.b16 %v1469, %v1467
          %v1584 = vpack.c.b16 %v1470, %v1468
          %v1585 = vpack.c.b16 %v1473, %v1471
          %v1586 = vpack.c.b16 %v1474, %v1472
          %v1587 = vpack.c.b16 %v1477, %v1475
          %v1588 = vpack.c.b16 %v1478, %v1476
          %v1589 = vpack.c.b16 %v1481, %v1479
          %v1590 = vpack.c.b16 %v1482, %v1480
          %v1591 = vpack.c.b16 %v1485, %v1483
          %v1592 = vpack.c.b16 %v1486, %v1484
          %v1593 = vpack.c.b16 %v1489, %v1487
          %v1594 = vpack.c.b16 %v1490, %v1488
          %v1595 = vpack.c.b16 %v1493, %v1491
          %v1596 = vpack.c.b16 %v1494, %v1492
          %v1597 = vpack.c.b16 %v1497, %v1495
          %v1598 = vpack.c.b16 %v1498, %v1496
          %v1599 = vpack.c.b16 %v1501, %v1499
          %v1600 = vpack.c.b16 %v1502, %v1500
          %v1601 = vpack.c.b16 %v1505, %v1503
          %v1602 = vpack.c.b16 %v1506, %v1504
          %v1603 = vpack.c.b16 %v1509, %v1507
          %v1604 = vpack.c.b16 %v1510, %v1508
          %v1605 = vpack.c.b16 %v1513, %v1511
          %v1606 = vpack.c.b16 %v1514, %v1512
          %v1607 = vpack.c.b16 %v1517, %v1515
          %v1608 = vpack.c.b16 %v1518, %v1516
          %v1609 = vpack.c.b16 %v1521, %v1519
          %v1610 = vpack.c.b16 %v1522, %v1520
          %v1611 = vpack.c.b16 %v1525, %v1523
          %v1612 = vpack.c.b16 %v1526, %v1524
          %v1613 = vpack.c.b16 %v1529, %v1527
          %v1614 = vpack.c.b16 %v1530, %v1528
          %v1615 = vpack.c.b16 %v1533, %v1531
          %v1616 = vpack.c.b16 %v1534, %v1532
          %v1617 = vpack.c.b16 %v1537, %v1535
          %v1618 = vpack.c.b16 %v1538, %v1536
          %v1619 = vpack.c.b16 %v1541, %v1539
          %v1620 = vpack.c.b16 %v1542, %v1540
          %v1621 = vpack.c.b16 %v1545, %v1543
          %v1622 = vpack.c.b16 %v1546, %v1544
          %v1623 = vpack.c.b16 %v1549, %v1547
          %v1624 = vpack.c.b16 %v1550, %v1548
          %v1625 = vpack.c.b16 %v1553, %v1551
          %v1626 = vpack.c.b16 %v1554, %v1552
          %v1627 = vpack.c.b16 %v1557, %v1555
          %v1628 = vpack.c.b16 %v1558, %v1556
          %v1629 = vpack.c.b16 %v1561, %v1559
          %v1630 = vpack.c.b16 %v1562, %v1560
          %v1631 = vpack.c.b16 %v1565, %v1563
          %v1632 = vpack.c.b16 %v1566, %v1564
          %v1633 = vpack.c.b16 %v1569, %v1567
          %v1634 = vpack.c.b16 %v1570, %v1568
          %1699 = vmatprep.subr.bf16.mxu0 %v1572
          %1700 = vmatpush1.bf16.msra.mxu0 %v1571
          %1701 = vmatprep.subr.bf16.mxu0 %v1574
          %1702 = vmatpush1.bf16.msra.mxu0 %v1573
          %1703 = vmatprep.subr.bf16.mxu0 %v1576
          %1704 = vmatpush1.bf16.msra.mxu0 %v1575
          %1705 = vmatprep.subr.bf16.mxu0 %v1578
          %1706 = vmatpush1.bf16.msra.mxu0 %v1577
          %1707 = vmatprep.subr.bf16.mxu0 %v1580
          %1708 = vmatpush1.bf16.msra.mxu0 %v1579
          %1709 = vmatprep.subr.bf16.mxu0 %v1582
          %1710 = vmatpush1.bf16.msra.mxu0 %v1581
          %1711 = vmatprep.subr.bf16.mxu0 %v1584
          %1712 = vmatpush1.bf16.msra.mxu0 %v1583
          %1713 = vmatprep.subr.bf16.mxu0 %v1586
          %1714 = vmatpush1.bf16.msra.mxu0 %v1585
          %1715 = vmatprep.subr.bf16.mxu0 %v1588
          %1716 = vmatpush1.bf16.msra.mxu0 %v1587
          %1717 = vmatprep.subr.bf16.mxu0 %v1590
          %1718 = vmatpush1.bf16.msra.mxu0 %v1589
          %1719 = vmatprep.subr.bf16.mxu0 %v1592
          %1720 = vmatpush1.bf16.msra.mxu0 %v1591
          %1721 = vmatprep.subr.bf16.mxu0 %v1594
          %1722 = vmatpush1.bf16.msra.mxu0 %v1593
          %1723 = vmatprep.subr.bf16.mxu0 %v1596
          %1724 = vmatpush1.bf16.msra.mxu0 %v1595
          %1725 = vmatprep.subr.bf16.mxu0 %v1598
          %1726 = vmatpush1.bf16.msra.mxu0 %v1597
          %1727 = vmatprep.subr.bf16.mxu0 %v1600
          %1728 = vmatpush1.bf16.msra.mxu0 %v1599
          %1729 = vmatprep.subr.bf16.mxu0 %v1602
          %1730 = vmatpush1.bf16.msra.mxu0 %v1601
          %1731 = vmatprep.mubr.bf16.mxu0 %v1300
          %1732 = vmatmul.mubr.bf16.gmra.mrb[0].mxu0 %v1299
          %v1733 = vpop.f32.mrb[0].mxu0
          %v1734 = vadd.f32 %v1372, %v1733
          %v1735 = vpop.f32.mrb[0].mxu0
          %v1736 = vadd.f32 %v1376, %v1735
          %v1737 = vpop.f32.mrb[0].mxu0
          %v1738 = vpop.f32.mrb[0].mxu0
          %1739 = vdwg.mxu0
          %1740 = vmatprep.subr.bf16.mxu0 %v1604
          %1741 = vmatpush1.bf16.msra.mxu0 %v1603
          %1742 = vmatprep.subr.bf16.mxu0 %v1606
          %1743 = vmatpush1.bf16.msra.mxu0 %v1605
          %1744 = vmatprep.subr.bf16.mxu0 %v1608
          %1745 = vmatpush1.bf16.msra.mxu0 %v1607
          %1746 = vmatprep.subr.bf16.mxu0 %v1610
          %1747 = vmatpush1.bf16.msra.mxu0 %v1609
          %1748 = vmatprep.subr.bf16.mxu0 %v1612
          %1749 = vmatpush1.bf16.msra.mxu0 %v1611
          %1750 = vmatprep.subr.bf16.mxu0 %v1614
          %1751 = vmatpush1.bf16.msra.mxu0 %v1613
          %1752 = vmatprep.subr.bf16.mxu0 %v1616
          %1753 = vmatpush1.bf16.msra.mxu0 %v1615
          %1754 = vmatprep.subr.bf16.mxu0 %v1618
          %1755 = vmatpush1.bf16.msra.mxu0 %v1617
          %1756 = vmatprep.subr.bf16.mxu0 %v1620
          %1757 = vmatpush1.bf16.msra.mxu0 %v1619
          %1758 = vmatprep.subr.bf16.mxu0 %v1622
          %1759 = vmatpush1.bf16.msra.mxu0 %v1621
          %1760 = vmatprep.subr.bf16.mxu0 %v1624
          %1761 = vmatpush1.bf16.msra.mxu0 %v1623
          %1762 = vmatprep.subr.bf16.mxu0 %v1626
          %1763 = vmatpush1.bf16.msra.mxu0 %v1625
          %1764 = vmatprep.subr.bf16.mxu0 %v1628
          %1765 = vmatpush1.bf16.msra.mxu0 %v1627
          %1766 = vmatprep.subr.bf16.mxu0 %v1630
          %1767 = vmatpush1.bf16.msra.mxu0 %v1629
          %1768 = vmatprep.subr.bf16.mxu0 %v1632
          %1769 = vmatpush1.bf16.msra.mxu0 %v1631
          %1770 = vmatprep.subr.bf16.mxu0 %v1634
          %1771 = vmatpush1.bf16.msra.mxu0 %v1633
          %1772 = vmatprep.mubr.bf16.mxu0 %v1302
          %1773 = vmatmul.mubr.bf16.gmra.mrb[0].mxu0 %v1301
          %v1774 = vpop.f32.mrb[0].mxu0
          %v1775 = vadd.f32 %v1734, %v1774
          %v1776 = vpop.f32.mrb[0].mxu0
          %v1777 = vadd.f32 %v1736, %v1776
          %v1778 = vpop.f32.mrb[0].mxu0
          %v1779 = vpop.f32.mrb[0].mxu0
          %1780 = vdwg.mxu0
          %v1781 = vmax.f32 %v1775, 0.0
          %v1782 = vmax.f32 %v1777, 0.0
          %v1783 = vpack.c.bf16 %v1781, %v1781
          %v1784 = vpack.c.bf16 %v1782, %v1782
          %v1785 = vld [vmem:[%s5] sm:$0xf]
          %v1786 = vld [vmem:[%s5 + $0x4] sm:$0xf]
          %v1787 = vld [vmem:[%s5 + $0x8] sm:$0xf]
          %v1788 = vld [vmem:[%s5 + $0xc] sm:$0xf]
          %v1789 = vld [vmem:[%s5 + $0x10] sm:$0xf]
          %v1790 = vld [vmem:[%s5 + $0x14] sm:$0xf]
          %v1791 = vld [vmem:[%s5 + $0x18] sm:$0xf]
          %v1792 = vld [vmem:[%s5 + $0x1c] sm:$0xf]
          %v1793 = vld [vmem:[%s5 + $0x20] sm:$0xf]
          %v1794 = vld [vmem:[%s5 + $0x24] sm:$0xf]
          %v1795 = vld [vmem:[%s5 + $0x28] sm:$0xf]
          %v1796 = vld [vmem:[%s5 + $0x2c] sm:$0xf]
          %v1797 = vld [vmem:[%s5 + $0x30] sm:$0xf]
          %v1798 = vld [vmem:[%s5 + $0x34] sm:$0xf]
          %v1799 = vld [vmem:[%s5 + $0x38] sm:$0xf]
          %v1800 = vld [vmem:[%s5 + $0x3c] sm:$0xf]
          %v1801 = vld [vmem:[%s5 + $0x40] sm:$0xf]
          %v1802 = vld [vmem:[%s5 + $0x44] sm:$0xf]
          %v1803 = vld [vmem:[%s5 + $0x48] sm:$0xf]
          %v1804 = vld [vmem:[%s5 + $0x4c] sm:$0xf]
          %v1805 = vld [vmem:[%s5 + $0x50] sm:$0xf]
          %v1806 = vld [vmem:[%s5 + $0x54] sm:$0xf]
          %v1807 = vld [vmem:[%s5 + $0x58] sm:$0xf]
          %v1808 = vld [vmem:[%s5 + $0x5c] sm:$0xf]
          %v1809 = vld [vmem:[%s5 + $0x60] sm:$0xf]
          %v1810 = vld [vmem:[%s5 + $0x64] sm:$0xf]
          %v1811 = vld [vmem:[%s5 + $0x68] sm:$0xf]
          %v1812 = vld [vmem:[%s5 + $0x6c] sm:$0xf]
          %v1813 = vld [vmem:[%s5 + $0x70] sm:$0xf]
          %v1814 = vld [vmem:[%s5 + $0x74] sm:$0xf]
          %v1815 = vld [vmem:[%s5 + $0x78] sm:$0xf]
          %v1816 = vld [vmem:[%s5 + $0x7c] sm:$0xf]
          %v1817 = vld [vmem:[%s6] sm:$0x1]
          %v1819 = vlaneseq
          %v1820 = vshrl.u32 %v1819, 7
          %v1821 = vsub.s32 0, %v1820
          %v1822 = vrot.slane %v1817, %v1821
          %v1856 = vunpack.c.l.b16 %v1785
          %v1857 = vunpack.c.l.b16 %v1786
          %v1858 = vunpack.c.l.b16 %v1787
          %v1859 = vunpack.c.l.b16 %v1788
          %v1860 = vunpack.c.l.b16 %v1789
          %v1861 = vunpack.c.l.b16 %v1790
          %v1862 = vunpack.c.l.b16 %v1791
          %v1863 = vunpack.c.l.b16 %v1792
          %v1864 = vunpack.c.l.b16 %v1793
          %v1865 = vunpack.c.l.b16 %v1794
          %v1866 = vunpack.c.l.b16 %v1795
          %v1867 = vunpack.c.l.b16 %v1796
          %v1868 = vunpack.c.l.b16 %v1797
          %v1869 = vunpack.c.l.b16 %v1798
          %v1870 = vunpack.c.l.b16 %v1799
          %v1871 = vunpack.c.l.b16 %v1800
          %v1872 = vunpack.c.l.b16 %v1801
          %v1873 = vunpack.c.l.b16 %v1802
          %v1874 = vunpack.c.l.b16 %v1803
          %v1875 = vunpack.c.l.b16 %v1804
          %v1876 = vunpack.c.l.b16 %v1805
          %v1877 = vunpack.c.l.b16 %v1806
          %v1878 = vunpack.c.l.b16 %v1807
          %v1879 = vunpack.c.l.b16 %v1808
          %v1880 = vunpack.c.l.b16 %v1809
          %v1881 = vunpack.c.l.b16 %v1810
          %v1882 = vunpack.c.l.b16 %v1811
          %v1883 = vunpack.c.l.b16 %v1812
          %v1884 = vunpack.c.l.b16 %v1813
          %v1885 = vunpack.c.l.b16 %v1814
          %v1886 = vunpack.c.l.b16 %v1815
          %v1887 = vunpack.c.l.b16 %v1816
          %v1888 = vpack.c.b16 %v1857, %v1856
          %v1889 = vpack.c.b16 %v1859, %v1858
          %v1890 = vpack.c.b16 %v1861, %v1860
          %v1891 = vpack.c.b16 %v1863, %v1862
          %v1892 = vpack.c.b16 %v1865, %v1864
          %v1893 = vpack.c.b16 %v1867, %v1866
          %v1894 = vpack.c.b16 %v1869, %v1868
          %v1895 = vpack.c.b16 %v1871, %v1870
          %v1896 = vpack.c.b16 %v1873, %v1872
          %v1897 = vpack.c.b16 %v1875, %v1874
          %v1898 = vpack.c.b16 %v1877, %v1876
          %v1899 = vpack.c.b16 %v1879, %v1878
          %v1900 = vpack.c.b16 %v1881, %v1880
          %v1901 = vpack.c.b16 %v1883, %v1882
          %v1902 = vpack.c.b16 %v1885, %v1884
          %v1903 = vpack.c.b16 %v1887, %v1886
          %1920 = vmatprep.subr.bf16.mxu0 0
          %1921 = vmatpush1.bf16.msra.mxu0 %v1888
          %1922 = vmatprep.subr.bf16.mxu0 0
          %1923 = vmatpush1.bf16.msra.mxu0 %v1889
          %1924 = vmatprep.subr.bf16.mxu0 0
          %1925 = vmatpush1.bf16.msra.mxu0 %v1890
          %1926 = vmatprep.subr.bf16.mxu0 0
          %1927 = vmatpush1.bf16.msra.mxu0 %v1891
          %1928 = vmatprep.subr.bf16.mxu0 0
          %1929 = vmatpush1.bf16.msra.mxu0 %v1892
          %1930 = vmatprep.subr.bf16.mxu0 0
          %1931 = vmatpush1.bf16.msra.mxu0 %v1893
          %1932 = vmatprep.subr.bf16.mxu0 0
          %1933 = vmatpush1.bf16.msra.mxu0 %v1894
          %1934 = vmatprep.subr.bf16.mxu0 0
          %1935 = vmatpush1.bf16.msra.mxu0 %v1895
          %1936 = vmatprep.subr.bf16.mxu0 0
          %1937 = vmatpush1.bf16.msra.mxu0 %v1896
          %1938 = vmatprep.subr.bf16.mxu0 0
          %1939 = vmatpush1.bf16.msra.mxu0 %v1897
          %1940 = vmatprep.subr.bf16.mxu0 0
          %1941 = vmatpush1.bf16.msra.mxu0 %v1898
          %1942 = vmatprep.subr.bf16.mxu0 0
          %1943 = vmatpush1.bf16.msra.mxu0 %v1899
          %1944 = vmatprep.subr.bf16.mxu0 0
          %1945 = vmatpush1.bf16.msra.mxu0 %v1900
          %1946 = vmatprep.subr.bf16.mxu0 0
          %1947 = vmatpush1.bf16.msra.mxu0 %v1901
          %1948 = vmatprep.subr.bf16.mxu0 0
          %1949 = vmatpush1.bf16.msra.mxu0 %v1902
          %1950 = vmatprep.subr.bf16.mxu0 0
          %1951 = vmatpush1.bf16.msra.mxu0 %v1903
          %1952 = vmatprep.mubr.bf16.mxu0 %v1784
          %1953 = vmatmul.mubr.bf16.gmra.mrb[0].mxu0 %v1783
          %v1954 = vpop.f32.mrb[0].mxu0
          %v1955 = vadd.f32 %v1822, %v1954
          %v1956 = vpop.f32.mrb[0].mxu0
          %v1957 = vpop.f32.mrb[0].mxu0
          %v1958 = vpop.f32.mrb[0].mxu0
          %1959 = vdwg.mxu0
          %1960 = vst [vmem:[#allocation3] sm:$0xff] %v1955
        $region56: #{a_call__.3} parent=47 // pred_fallthru
          _
        // Predicated region
        $region57: #{a_call__.3} parent=47 // pred_check
          %p1961 = pneg %p189
        $region58: #{a_call__.3} parent=47 // pred_check_branch
          %1963 = sbr.rel (%p1961) target = $region60
        $region59: #{a_call__.3} parent=47 // pred_region
          %s1965 = ssub.s32 128, 128
          %1966 = vsyncadd [#allocation4], %s1965
          %s1968 = sshll.u32 [#allocation3], 4
          %s1969 = int_to_ptr.vmem [resolvable:$true] %s1968
          %1971 = dma.vmem_to_hbm [thread:$0]  %s1969, 128, %s7, [#allocation4]
        $region60: #{a_call__.3} parent=47 // pred_fallthru
          _
        // Predicated region
        $region61: #{a_call__.3} parent=47 // pred_check
          %p1972 = pneg %p189
        $region62: #{a_call__.3} parent=47 // pred_check_branch
          %1974 = sbr.rel (%p1972) target = $region64
        $region63: #{a_call__.3} parent=47 // pred_region
          %1975 = dma.done [#allocation4], 128
        $region64: #{a_call__.3} parent=47 // pred_fallthru
          _
      $region48: #{a_call__.3} parent=5 // pred_fallthru
        _
      %p1976 = scmp.le.s32.totalorder 2, %s14
      // Predicated region
      $region65: #{a_call__.3} parent=5 // pred_check
        %p1977 = pneg %p1976
      $region66: #{a_call__.3} parent=5 // pred_check_branch
        %1979 = sbr.rel (%p1977) target = $region68
      $region67: #{a_call__.3} parent=5 // pred_region
        %s1980 = ssub.s32 %s14, 2
      $region68: #{a_call__.3} parent=5 // pred_fallthru
        _
    $region6: #{a_call__.3} parent=1 // loop_footer
      %s18 = sadd.s32 1, %s14
    $region7: #{a_call__.3} parent=1 // loop_footer_branch
      %13 = sbr.rel target = $region3
    $region8: #{a_call__.3} parent=1 // loop_exit
      _
    %1981 = vsyncpa [#allocation4], 1
    %s1982 = scalar_lea.sflag [#allocation4], 1
    %1983 = vsyncpa %s1982, 1

</llo_original>
